<compile_context>
chip_gen: v7x
topology: tpu7x:2x2x1
jax: 0.10.0
libtpu: 0.0.40
codegen_flags: <defaults>
</compile_context>

<pallas_src>
import jax
import jax.numpy as jnp
from jax import lax
from jax.experimental import pallas as pl
from jax.experimental.pallas import tpu as pltpu  # noqa: F401

# ----------------------- model hyper-parameters -----------------------
BATCH        = 2
Z_DIM        = 8
STYLE_DIM    = 16          # MappingNet width; style vector is 2*STYLE_DIM
NUM_CHANNELS = 8
NUM_BLOCKS   = 2           # must be even (blocks consumed in pairs)
NUM_CURVES   = 16
NUM_CLASSES  = 10          # stands in for len(CHARACTER_INDICES)
INIT_WIDTH   = int(NUM_CURVES / 2 ** (NUM_BLOCKS / 2))   # == 8

NB_TOTAL = 2 + NUM_BLOCKS                 # sb1, sb2, blk0 .. blk{NUM_BLOCKS-1}
BC       = BATCH * NUM_CHANNELS           # batch folded onto channel rows


# ------------- static slab layout (shared by packer and kernel) -------------
def _build_layout():
    B, S, Z = BATCH, STYLE_DIM, Z_DIM
    mat, vec = [], []
    mat += [("wm0", B * S, B * Z), ("wm1", B * S, B * S), ("wm2", B * S, B * S),
            ("wfca", NB_TOTAL * 2 * BC, B * S),
            ("wfce", NB_TOTAL * 2 * BC, B * S),
            ("normed0", BC, INIT_WIDTH)]
    vec += [("bm0", B * S), ("bm1", B * S), ("bm2", B * S),
            ("bfc", NB_TOTAL * 2 * BC)]
    L = INIT_WIDTH
    for blk in range(1, NB_TOTAL):
        if blk >= 2 and blk % 2 == 0:         # x2 upsample fused into this block
            mat += [(f"op{blk}_r", L, 2 * L), (f"op{blk}_c", L, 2 * L),
                    (f"op{blk}_l", L, 2 * L)]
            L *= 2
        else:
            mat += [(f"op{blk}_r", L, L), (f"op{blk}_l", L, L)]
        mat += [(f"wc{blk}", BC, 3 * BC)]
        vec += [(f"cb{blk}", BC)]
    mat += [("wout", B * 6, BC), ("rollm", NUM_CURVES, NUM_CURVES)]
    vec += [("ob", B * 6), ("rollmask", B * 6)]

    def offsets(entries):
        table, r = {}, 0
        for e in entries:
            table[e[0]] = (r,) + tuple(e[1:])
            r += -(-e[1] // 8) * 8            # 8-sublane-aligned row offsets
        return table, r

    moff, mrows = offsets(mat)
    voff, vrows = offsets(vec)
    mwidth = max(c for _, _, c in mat)        # 3*BC == 48
    return mat, vec, moff, voff, mrows, vrows, mwidth


(_MAT_ENTRIES, _VEC_ENTRIES, _MOFF, _VOFF,
 _MROWS, _VROWS, _MWIDTH) = _build_layout()


# ----------------------- fused Pallas kernel -----------------------
def _stylenet_kernel(zin_ref, wslab_ref, vslab_ref, o_ref):
    f32 = jnp.float32
    B, S, Z = BATCH, STYLE_DIM, Z_DIM

    def W(name):                               # static slab slice -> matrix
        r, h, w = _MOFF[name]
        return wslab_ref[r:r + h, 0:w]

    def V(name):                               # static slab slice -> column
        r, h = _VOFF[name]
        return vslab_ref[r:r + h, 0:1]

    def mm(a, b):
        return jnp.dot(a, b, preferred_element_type=f32)

    def elu(v):                                # F.elu, alpha=1
        return jnp.where(v > 0.0, v, jnp.exp(jnp.minimum(v, 0.0)) - 1.0)

    z_col   = zin_ref[0:B * Z, :]              # (B*Z, 1) per-batch z, stacked
    emb_col = zin_ref[B * Z:B * Z + B * S, :]  # (B*S, 1) class embeddings

    # ---- MappingNet, batch folded into rows (block-diagonal weights) ----
    a = elu(mm(W("wm0"), z_col) + V("bm0"))
    a = elu(mm(W("wm1"), a) + V("bm1"))
    a = elu(mm(W("wm2"), a) + V("bm2"))

    # ---- every StyleBlock's style-FC in ONE matmul pair; output column is
    #      already ordered (block, gains|biases, batch, channel) ----
    G = mm(W("wfca"), a) + mm(W("wfce"), emb_col) + V("bfc")   # (NB*2*BC, 1)

    def gains_biases(blk):
        base = blk * 2 * BC
        return G[base:base + BC, :], G[base + BC:base + 2 * BC, :]

    def adain(act, blk, L):
        # two independent lane reductions -> shorter XLU critical path
        s1 = jnp.sum(act, axis=1, keepdims=True)
        s2 = jnp.sum(act * act, axis=1, keepdims=True)
        mean = s1 * (1.0 / L)
        var = (s2 - s1 * mean) * (1.0 / (L - 1))   # unbiased (torch.var default)
        g, bi = gains_biases(blk)
        return g * ((act - mean) * lax.rsqrt(var + 1e-8)) + bi

    # ---- styleblock1: conv/ReLU/instance-norm pre-folded host-side;
    #      only the per-batch AdaIN affine remains (pure VPU) ----
    g0, b0 = gains_biases(0)
    x = g0 * W("normed0") + b0                     # (BC, INIT_WIDTH)

    # ---- remaining blocks: Conv1d(k=3,'same') + ReLU + AdaIN, batch-folded ----
    L = INIT_WIDTH
    for blk in range(1, NB_TOTAL):
        if blk >= 2 and blk % 2 == 0:
            # nearest-x2 upsample fused into the three shift operators
            xs = jnp.concatenate(
                [mm(x, W(f"op{blk}_r")), mm(x, W(f"op{blk}_c")),
                 mm(x, W(f"op{blk}_l"))], axis=0)  # (3*BC, 2L)
            L *= 2
        else:
            xs = jnp.concatenate(
                [mm(x, W(f"op{blk}_r")), x, mm(x, W(f"op{blk}_l"))], axis=0)
        act = jnp.maximum(mm(W(f"wc{blk}"), xs) + V(f"cb{blk}"), 0.0)
        x = adain(act, blk, L)

    # ---- epilogue: 1x1 out-conv (rows [2,3,0,1,2,3] per batch) + circular
    #      roll of the first two rows per batch, single full-block store ----
    out = mm(W("wout"), x) + V("ob")               # (B*6, L)
    rolled = mm(out, W("rollm"))
    o_ref[...] = out + V("rollmask") * (rolled - out)


# ----------------------- parameters -----------------------
def init_params(key):
    ks = iter(jax.random.split(key, 64))

    def nrm(shape, scale=0.2):
        return jax.random.normal(next(ks), shape, dtype=jnp.float32) * scale

    def style_block_params(initial=False):
        p = {
            "conv_w": nrm((NUM_CHANNELS, NUM_CHANNELS, 3)),
            "conv_b": nrm((NUM_CHANNELS,)),
            "fc_w": nrm((2 * STYLE_DIM, 2 * NUM_CHANNELS)),
            "fc_b": nrm((2 * NUM_CHANNELS,)),
        }
        if initial:
            p["initial"] = nrm((1, NUM_CHANNELS), 1.0)
            p["init_fc_w"] = nrm((NUM_CHANNELS, NUM_CHANNELS * INIT_WIDTH))
            p["init_fc_b"] = nrm((NUM_CHANNELS * INIT_WIDTH,))
        return p

    params = {
        "map_fc_w": nrm((Z_DIM, STYLE_DIM)),
        "map_fc_b": nrm((STYLE_DIM,)),
        "map_l0_w": nrm((STYLE_DIM, STYLE_DIM)),
        "map_l0_b": nrm((STYLE_DIM,)),
        "map_l1_w": nrm((STYLE_DIM, STYLE_DIM)),
        "map_l1_b": nrm((STYLE_DIM,)),
        "embed": nrm((NUM_CLASSES, STYLE_DIM), 1.0),
        "sb1": style_block_params(initial=True),
        "sb2": style_block_params(),
        "out_w": nrm((4, NUM_CHANNELS)),
        "out_b": nrm((4,)),
    }
    for i in range(NUM_BLOCKS):
        params[f"blk{i}"] = style_block_params()
    return params


def prepare_params(params):
    """One-time host-side weight re-layout: batch-block-diagonal weights,
    fused style-FCs, pre-folded styleblock1 constant path, fused
    upsample/shift/roll operators — all packed into two f32 slabs."""
    B, C, S = BATCH, NUM_CHANNELS, STYLE_DIM
    eyeB = jnp.eye(B, dtype=jnp.float32)
    blocks = ([params["sb1"], params["sb2"]]
              + [params[f"blk{i}"] for i in range(NUM_BLOCKS)])

    def kron_b(w):                              # block-diagonal over batch
        return jnp.kron(eyeB, w.astype(jnp.float32))

    mats, vecs = {}, {}

    # MappingNet (column-vector activations, batch stacked along rows)
    mats["wm0"] = kron_b(params["map_fc_w"].T)
    mats["wm1"] = kron_b(params["map_l0_w"].T)
    mats["wm2"] = kron_b(params["map_l1_w"].T)
    vecs["bm0"] = jnp.tile(params["map_fc_b"], B)
    vecs["bm1"] = jnp.tile(params["map_l0_b"], B)
    vecs["bm2"] = jnp.tile(params["map_l1_b"], B)

    # All style-FCs fused; output ordered (block, gains|biases, batch, channel)
    fc_w = jnp.stack([p["fc_w"] for p in blocks], 0)          # (NB, 2S, 2C)
    fc_b = jnp.stack([p["fc_b"] for p in blocks], 0)          # (NB, 2C)
    A_a = jnp.transpose(fc_w[:, :S, :], (0, 2, 1)).reshape(NB_TOTAL, 2, C, S)
    A_e = jnp.transpose(fc_w[:, S:, :], (0, 2, 1)).reshape(NB_TOTAL, 2, C, S)
    mats["wfca"] = jnp.einsum("nkcs,bd->nkbcds", A_a, eyeB).reshape(
        NB_TOTAL * 2 * BC, B * S)
    mats["wfce"] = jnp.einsum("nkcs,bd->nkbcds", A_e, eyeB).reshape(
        NB_TOTAL * 2 * BC, B * S)
    vecs["bfc"] = jnp.broadcast_to(
        fc_b.reshape(NB_TOTAL, 2, 1, C), (NB_TOTAL, 2, B, C)).reshape(-1)

    # styleblock1: parameter-only conv + ReLU + instance-norm, folded here
    p1 = params["sb1"]
    x0 = (p1["initial"] @ p1["init_fc_w"] + p1["init_fc_b"]).reshape(C, INIT_WIDTH)
    xp = jnp.pad(x0, ((0, 0), (1, 1)))
    conv0 = sum(p1["conv_w"][:, :, k] @ xp[:, k:k + INIT_WIDTH] for k in range(3))
    act0 = jnp.maximum(conv0 + p1["conv_b"][:, None], 0.0)
    mean0 = jnp.mean(act0, axis=1, keepdims=True)
    var0 = jnp.sum((act0 - mean0) ** 2, axis=1, keepdims=True) / (INIT_WIDTH - 1)
    mats["normed0"] = jnp.tile((act0 - mean0) * lax.rsqrt(var0 + 1e-8), (B, 1))

    # shift / upsample / roll constants (built once, shipped inside the slab)
    def shift_mats(L):
        r = jnp.arange(L)
        sr = (r[:, None] + 1 == r[None, :]).astype(jnp.float32)  # x@sr -> x[:,l-1]
        sl = (r[:, None] == r[None, :] + 1).astype(jnp.float32)  # x@sl -> x[:,l+1]
        return sr, sl

    def up_mat(L):                               # x@up -> nearest x2 upsample
        return (jnp.arange(2 * L)[None, :] // 2
                == jnp.arange(L)[:, None]).astype(jnp.float32)

    def roll_mat(L):                             # x@r -> torch.roll(x, 1, -1)
        r = jnp.arange(L)
        return ((r[:, None] + 1) % L == r[None, :]).astype(jnp.float32)

    L = INIT_WIDTH
    for blk in range(1, NB_TOTAL):
        p = blocks[blk]
        if blk >= 2 and blk % 2 == 0:
            sr2, sl2 = shift_mats(2 * L)
            U = up_mat(L)
            mats[f"op{blk}_r"] = U @ sr2         # upsample fused with the shifts
            mats[f"op{blk}_c"] = U
            mats[f"op{blk}_l"] = U @ sl2
            L *= 2
        else:
            mats[f"op{blk}_r"], mats[f"op{blk}_l"] = shift_mats(L)
        # W''[b*C+co, k*BC + b*C+ci] = conv_w[co, ci, k]  (batch block-diagonal)
        mats[f"wc{blk}"] = jnp.concatenate(
            [kron_b(p["conv_w"][:, :, k]) for k in range(3)], axis=1)
        vecs[f"cb{blk}"] = jnp.tile(p["conv_b"], B)

    # epilogue constants: out-conv rows [2,3,0,1,2,3] per batch, roll, mask
    ow6 = jnp.concatenate([params["out_w"][2:4], params["out_w"]], axis=0)
    ob6 = jnp.concatenate([params["out_b"][2:4], params["out_b"]], axis=0)
    mats["wout"] = kron_b(ow6)
    vecs["ob"] = jnp.tile(ob6, B)
    mats["rollm"] = roll_mat(NUM_CURVES)
    vecs["rollmask"] = jnp.tile(
        jnp.array([1.0, 1.0, 0.0, 0.0, 0.0, 0.0], jnp.float32), B)

    # pack everything into the two slabs (single DMA each)
    wslab = jnp.zeros((_MROWS, _MWIDTH), jnp.float32)
    for name, rows, cols in _MAT_ENTRIES:
        r0 = _MOFF[name][0]
        wslab = wslab.at[r0:r0 + rows, 0:cols].set(mats[name].astype(jnp.float32))
    vslab = jnp.zeros((_VROWS, 1), jnp.float32)
    for name, rows in _VEC_ENTRIES:
        r0 = _VOFF[name][0]
        vslab = vslab.at[r0:r0 + rows, 0].set(vecs[name].astype(jnp.float32))

    return {"wslab": wslab, "vslab": vslab, "embed": params["embed"]}


# ----------------------- forward pass -----------------------
@jax.jit
def stylenet_forward(prepped, z, classes):
    B = z.shape[0]
    # tiny glue: embedding gather + stacking z / emb into one column input
    zin = jnp.concatenate(
        [z.reshape(-1, 1), prepped["embed"][classes].reshape(-1, 1)],
        axis=0).astype(jnp.float32)
    out = pl.pallas_call(
        _stylenet_kernel,
        out_shape=jax.ShapeDtypeStruct((B * 6, NUM_CURVES), jnp.float32),
    )(zin, prepped["wslab"], prepped["vslab"])
    return out.reshape(B, 6, NUM_CURVES)          # free bitcast reshape


# ----------------- pure-JAX reference (for validation) -----------------
def _ref_forward(params, z, classes):
    def lin(x, w, b): return x @ w + b
    def elu(x): return jnp.where(x > 0, x, jnp.exp(jnp.minimum(x, 0.0)) - 1.0)

    a = elu(lin(z, params["map_fc_w"], params["map_fc_b"]))
    a = elu(lin(a, params["map_l0_w"], params["map_l0_b"]))
    a = elu(lin(a, params["map_l1_w"], params["map_l1_b"]))
    style = jnp.concatenate([a, params["embed"][classes]], axis=-1)

    def conv1d(x, w, b):            # x (B,C,L), w (Co,Ci,K), 'same' padding
        K = w.shape[2]
        pad = (K - 1) // 2
        xp = jnp.pad(x, ((0, 0), (0, 0), (pad, pad)))
        out = sum(jnp.einsum("oi,bil->bol", w[:, :, k],
                             xp[:, :, k:k + x.shape[2]]) for k in range(K))
        return out + b[None, :, None]

    def adain(x, g, bi):
        mean = x.mean(axis=2, keepdims=True)
        var = jnp.sum((x - mean) ** 2, axis=2, keepdims=True) / (x.shape[2] - 1)
        return g * ((x - mean) * lax.rsqrt(var + 1e-8)) + bi

    def block(p, x):
        gb = lin(style, p["fc_w"], p["fc_b"])
        g, bi = gb[:, :NUM_CHANNELS, None], gb[:, NUM_CHANNELS:, None]
        return adain(jax.nn.relu(conv1d(x, p["conv_w"], p["conv_b"])), g, bi)

    p1 = params["sb1"]
    x0 = lin(p1["initial"], p1["init_fc_w"], p1["init_fc_b"]).reshape(
        1, NUM_CHANNELS, INIT_WIDTH)
    x = jnp.broadcast_to(x0, (z.shape[0], NUM_CHANNELS, INIT_WIDTH))
    x = block(p1, x)
    x = block(params["sb2"], x)
    for i in range(0, NUM_BLOCKS, 2):
        x = jnp.repeat(x, 2, axis=-1)
        x = block(params[f"blk{i}"], x)
        x = block(params[f"blk{i + 1}"], x)
    implicits = jnp.einsum("oi,bil->bol", params["out_w"], x) \
        + params["out_b"][None, :, None]
    return jnp.concatenate(
        [jnp.roll(implicits[:, 2:, :], 1, axis=-1), implicits], axis=1)


if __name__ == "__main__":
    key = jax.random.PRNGKey(0)
    pkey, zkey, ckey = jax.random.split(key, 3)
    params = init_params(pkey)
    prepped = prepare_params(params)

    z = jax.random.normal(zkey, (BATCH, Z_DIM), dtype=jnp.float32)
    classes = jax.random.randint(ckey, (BATCH,), 0, NUM_CLASSES)

    out = jax.block_until_ready(stylenet_forward(prepped, z, classes))
    assert out.shape == (BATCH, 6, NUM_CURVES), out.shape
    assert bool(jnp.all(jnp.isfinite(out)))

    ref = _ref_forward(params, z, classes)
    assert jnp.allclose(out, ref, rtol=5e-2, atol=5e-2), \
        float(jnp.max(jnp.abs(out - ref)))

    print("KERNEL_OK")
</pallas_src>

<mosaic_0001>
module attributes {stable_mosaic.version = 11 : i64} {
  func.func @_stylenet_kernel(%arg0: memref<48x1xf32, #tpu.memory_space<vmem>>, %arg1: memref<520x48xf32, #tpu.memory_space<vmem>>, %arg2: memref<304x1xf32, #tpu.memory_space<vmem>>, %arg3: memref<12x16xf32, #tpu.memory_space<vmem>>) attributes {dimension_semantics = [], scalar_prefetch = 0 : i64, scratch_operands = 0 : i64, tpu.core_type = #tpu.core_type<tc>} {
    %c0 = arith.constant 0 : index
    %c0_0 = arith.constant 0 : index
    %0 = vector.load %arg0[%c0, %c0_0] : memref<48x1xf32, #tpu.memory_space<vmem>>, vector<16x1xf32>
    %c16 = arith.constant 16 : index
    %c0_1 = arith.constant 0 : index
    %1 = vector.load %arg0[%c16, %c0_1] : memref<48x1xf32, #tpu.memory_space<vmem>>, vector<32x1xf32>
    %c0_2 = arith.constant 0 : index
    %c0_3 = arith.constant 0 : index
    %2 = vector.load %arg1[%c0_2, %c0_3] : memref<520x48xf32, #tpu.memory_space<vmem>>, vector<32x16xf32>
    %cst = arith.constant dense<0.000000e+00> : vector<32x1xf32>
    %3 = tpu.matmul %2, %0, %cst {dimension_numbers = #tpu.dot_dimension_numbers<[1], [0], [0], [1], [0, 0, 1, 1], [], []>} : vector<32x16xf32>, vector<16x1xf32>, vector<32x1xf32> -> vector<32x1xf32>
    %c0_4 = arith.constant 0 : index
    %c0_5 = arith.constant 0 : index
    %4 = vector.load %arg2[%c0_4, %c0_5] : memref<304x1xf32, #tpu.memory_space<vmem>>, vector<32x1xf32>
    %5 = arith.addf %3, %4 : vector<32x1xf32>
    %cst_6 = arith.constant 0.000000e+00 : f32
    %6 = vector.broadcast %cst_6 : f32 to vector<32x1xf32>
    %7 = arith.cmpf ogt, %5, %6 : vector<32x1xf32>
    %cst_7 = arith.constant 0.000000e+00 : f32
    %8 = vector.broadcast %cst_7 : f32 to vector<32x1xf32>
    %9 = arith.minimumf %5, %8 : vector<32x1xf32>
    %10 = math.exp %9 : vector<32x1xf32>
    %cst_8 = arith.constant 1.000000e+00 : f32
    %11 = vector.broadcast %cst_8 : f32 to vector<32x1xf32>
    %12 = arith.subf %10, %11 : vector<32x1xf32>
    %13 = arith.select %7, %5, %12 : vector<32x1xi1>, vector<32x1xf32>
    %c32 = arith.constant 32 : index
    %c0_9 = arith.constant 0 : index
    %14 = vector.load %arg1[%c32, %c0_9] : memref<520x48xf32, #tpu.memory_space<vmem>>, vector<32x32xf32>
    %cst_10 = arith.constant dense<0.000000e+00> : vector<32x1xf32>
    %15 = tpu.matmul %14, %13, %cst_10 {dimension_numbers = #tpu.dot_dimension_numbers<[1], [0], [0], [1], [0, 0, 1, 1], [], []>} : vector<32x32xf32>, vector<32x1xf32>, vector<32x1xf32> -> vector<32x1xf32>
    %c32_11 = arith.constant 32 : index
    %c0_12 = arith.constant 0 : index
    %16 = vector.load %arg2[%c32_11, %c0_12] : memref<304x1xf32, #tpu.memory_space<vmem>>, vector<32x1xf32>
    %17 = arith.addf %15, %16 : vector<32x1xf32>
    %cst_13 = arith.constant 0.000000e+00 : f32
    %18 = vector.broadcast %cst_13 : f32 to vector<32x1xf32>
    %19 = arith.cmpf ogt, %17, %18 : vector<32x1xf32>
    %cst_14 = arith.constant 0.000000e+00 : f32
    %20 = vector.broadcast %cst_14 : f32 to vector<32x1xf32>
    %21 = arith.minimumf %17, %20 : vector<32x1xf32>
    %22 = math.exp %21 : vector<32x1xf32>
    %cst_15 = arith.constant 1.000000e+00 : f32
    %23 = vector.broadcast %cst_15 : f32 to vector<32x1xf32>
    %24 = arith.subf %22, %23 : vector<32x1xf32>
    %25 = arith.select %19, %17, %24 : vector<32x1xi1>, vector<32x1xf32>
    %c64 = arith.constant 64 : index
    %c0_16 = arith.constant 0 : index
    %26 = vector.load %arg1[%c64, %c0_16] : memref<520x48xf32, #tpu.memory_space<vmem>>, vector<32x32xf32>
    %cst_17 = arith.constant dense<0.000000e+00> : vector<32x1xf32>
    %27 = tpu.matmul %26, %25, %cst_17 {dimension_numbers = #tpu.dot_dimension_numbers<[1], [0], [0], [1], [0, 0, 1, 1], [], []>} : vector<32x32xf32>, vector<32x1xf32>, vector<32x1xf32> -> vector<32x1xf32>
    %c64_18 = arith.constant 64 : index
    %c0_19 = arith.constant 0 : index
    %28 = vector.load %arg2[%c64_18, %c0_19] : memref<304x1xf32, #tpu.memory_space<vmem>>, vector<32x1xf32>
    %29 = arith.addf %27, %28 : vector<32x1xf32>
    %cst_20 = arith.constant 0.000000e+00 : f32
    %30 = vector.broadcast %cst_20 : f32 to vector<32x1xf32>
    %31 = arith.cmpf ogt, %29, %30 : vector<32x1xf32>
    %cst_21 = arith.constant 0.000000e+00 : f32
    %32 = vector.broadcast %cst_21 : f32 to vector<32x1xf32>
    %33 = arith.minimumf %29, %32 : vector<32x1xf32>
    %34 = math.exp %33 : vector<32x1xf32>
    %cst_22 = arith.constant 1.000000e+00 : f32
    %35 = vector.broadcast %cst_22 : f32 to vector<32x1xf32>
    %36 = arith.subf %34, %35 : vector<32x1xf32>
    %37 = arith.select %31, %29, %36 : vector<32x1xi1>, vector<32x1xf32>
    %c96 = arith.constant 96 : index
    %c0_23 = arith.constant 0 : index
    %38 = vector.load %arg1[%c96, %c0_23] : memref<520x48xf32, #tpu.memory_space<vmem>>, vector<128x32xf32>
    %cst_24 = arith.constant dense<0.000000e+00> : vector<128x1xf32>
    %39 = tpu.matmul %38, %37, %cst_24 {dimension_numbers = #tpu.dot_dimension_numbers<[1], [0], [0], [1], [0, 0, 1, 1], [], []>} : vector<128x32xf32>, vector<32x1xf32>, vector<128x1xf32> -> vector<128x1xf32>
    %c224 = arith.constant 224 : index
    %c0_25 = arith.constant 0 : index
    %40 = vector.load %arg1[%c224, %c0_25] : memref<520x48xf32, #tpu.memory_space<vmem>>, vector<128x32xf32>
    %cst_26 = arith.constant dense<0.000000e+00> : vector<128x1xf32>
    %41 = tpu.matmul %40, %1, %cst_26 {dimension_numbers = #tpu.dot_dimension_numbers<[1], [0], [0], [1], [0, 0, 1, 1], [], []>} : vector<128x32xf32>, vector<32x1xf32>, vector<128x1xf32> -> vector<128x1xf32>
    %42 = arith.addf %39, %41 : vector<128x1xf32>
    %c96_27 = arith.constant 96 : index
    %c0_28 = arith.constant 0 : index
    %43 = vector.load %arg2[%c96_27, %c0_28] : memref<304x1xf32, #tpu.memory_space<vmem>>, vector<128x1xf32>
    %44 = arith.addf %42, %43 : vector<128x1xf32>
    %45 = vector.extract_strided_slice %44 {offsets = [0, 0], sizes = [16, 1], strides = [1, 1]} : vector<128x1xf32> to vector<16x1xf32>
    %46 = vector.extract_strided_slice %44 {offsets = [16, 0], sizes = [16, 1], strides = [1, 1]} : vector<128x1xf32> to vector<16x1xf32>
    %c352 = arith.constant 352 : index
    %c0_29 = arith.constant 0 : index
    %47 = vector.load %arg1[%c352, %c0_29] : memref<520x48xf32, #tpu.memory_space<vmem>>, vector<16x8xf32>
    %48 = vector.broadcast %45 : vector<16x1xf32> to vector<16x8xf32>
    %49 = arith.mulf %48, %47 : vector<16x8xf32>
    %50 = vector.broadcast %46 : vector<16x1xf32> to vector<16x8xf32>
    %51 = arith.addf %49, %50 : vector<16x8xf32>
    %c368 = arith.constant 368 : index
    %c0_30 = arith.constant 0 : index
    %52 = vector.load %arg1[%c368, %c0_30] : memref<520x48xf32, #tpu.memory_space<vmem>>, vector<8x8xf32>
    %cst_31 = arith.constant dense<0.000000e+00> : vector<16x8xf32>
    %53 = tpu.matmul %51, %52, %cst_31 {dimension_numbers = #tpu.dot_dimension_numbers<[1], [0], [0], [1], [0, 0, 1, 1], [], []>} : vector<16x8xf32>, vector<8x8xf32>, vector<16x8xf32> -> vector<16x8xf32>
    %c376 = arith.constant 376 : index
    %c0_32 = arith.constant 0 : index
    %54 = vector.load %arg1[%c376, %c0_32] : memref<520x48xf32, #tpu.memory_space<vmem>>, vector<8x8xf32>
    %cst_33 = arith.constant dense<0.000000e+00> : vector<16x8xf32>
    %55 = tpu.matmul %51, %54, %cst_33 {dimension_numbers = #tpu.dot_dimension_numbers<[1], [0], [0], [1], [0, 0, 1, 1], [], []>} : vector<16x8xf32>, vector<8x8xf32>, vector<16x8xf32> -> vector<16x8xf32>
    %56 = tpu.concatenate %53, %51, %55 in 0 : vector<16x8xf32>, vector<16x8xf32>, vector<16x8xf32> -> vector<48x8xf32>
    %c384 = arith.constant 384 : index
    %c0_34 = arith.constant 0 : index
    %57 = vector.load %arg1[%c384, %c0_34] : memref<520x48xf32, #tpu.memory_space<vmem>>, vector<16x48xf32>
    %cst_35 = arith.constant dense<0.000000e+00> : vector<16x8xf32>
    %58 = tpu.matmul %57, %56, %cst_35 {dimension_numbers = #tpu.dot_dimension_numbers<[1], [0], [0], [1], [0, 0, 1, 1], [], []>} : vector<16x48xf32>, vector<48x8xf32>, vector<16x8xf32> -> vector<16x8xf32>
    %c224_36 = arith.constant 224 : index
    %c0_37 = arith.constant 0 : index
    %59 = vector.load %arg2[%c224_36, %c0_37] : memref<304x1xf32, #tpu.memory_space<vmem>>, vector<16x1xf32>
    %60 = vector.broadcast %59 : vector<16x1xf32> to vector<16x8xf32>
    %61 = arith.addf %58, %60 : vector<16x8xf32>
    %cst_38 = arith.constant 0.000000e+00 : f32
    %62 = vector.broadcast %cst_38 : f32 to vector<16x8xf32>
    %63 = arith.maximumf %61, %62 : vector<16x8xf32>
    %cst_39 = arith.constant dense<0.000000e+00> : vector<16xf32>
    %64 = vector.multi_reduction <add>, %63, %cst_39 [1] : vector<16x8xf32> to vector<16xf32>
    %65 = vector.shape_cast %64 : vector<16xf32> to vector<16x1xf32>
    %66 = arith.mulf %63, %63 : vector<16x8xf32>
    %cst_40 = arith.constant dense<0.000000e+00> : vector<16xf32>
    %67 = vector.multi_reduction <add>, %66, %cst_40 [1] : vector<16x8xf32> to vector<16xf32>
    %68 = vector.shape_cast %67 : vector<16xf32> to vector<16x1xf32>
    %cst_41 = arith.constant 1.250000e-01 : f32
    %69 = vector.broadcast %cst_41 : f32 to vector<16x1xf32>
    %70 = arith.mulf %65, %69 : vector<16x1xf32>
    %71 = arith.mulf %65, %70 : vector<16x1xf32>
    %72 = arith.subf %68, %71 : vector<16x1xf32>
    %cst_42 = arith.constant 0.142857149 : f32
    %73 = vector.broadcast %cst_42 : f32 to vector<16x1xf32>
    %74 = arith.mulf %72, %73 : vector<16x1xf32>
    %75 = vector.extract_strided_slice %44 {offsets = [32, 0], sizes = [16, 1], strides = [1, 1]} : vector<128x1xf32> to vector<16x1xf32>
    %76 = vector.extract_strided_slice %44 {offsets = [48, 0], sizes = [16, 1], strides = [1, 1]} : vector<128x1xf32> to vector<16x1xf32>
    %77 = vector.broadcast %70 : vector<16x1xf32> to vector<16x8xf32>
    %78 = arith.subf %63, %77 : vector<16x8xf32>
    %cst_43 = arith.constant 9.99999993E-9 : f32
    %79 = vector.broadcast %cst_43 : f32 to vector<16x1xf32>
    %80 = arith.addf %74, %79 : vector<16x1xf32>
    %81 = math.rsqrt %80 : vector<16x1xf32>
    %82 = vector.broadcast %81 : vector<16x1xf32> to vector<16x8xf32>
    %83 = arith.mulf %78, %82 : vector<16x8xf32>
    %84 = vector.broadcast %75 : vector<16x1xf32> to vector<16x8xf32>
    %85 = arith.mulf %84, %83 : vector<16x8xf32>
    %86 = vector.broadcast %76 : vector<16x1xf32> to vector<16x8xf32>
    %87 = arith.addf %85, %86 : vector<16x8xf32>
    %c400 = arith.constant 400 : index
    %c0_44 = arith.constant 0 : index
    %88 = vector.load %arg1[%c400, %c0_44] : memref<520x48xf32, #tpu.memory_space<vmem>>, vector<8x16xf32>
    %cst_45 = arith.constant dense<0.000000e+00> : vector<16x16xf32>
    %89 = tpu.matmul %87, %88, %cst_45 {dimension_numbers = #tpu.dot_dimension_numbers<[1], [0], [0], [1], [0, 0, 1, 1], [], []>} : vector<16x8xf32>, vector<8x16xf32>, vector<16x16xf32> -> vector<16x16xf32>
    %c408 = arith.constant 408 : index
    %c0_46 = arith.constant 0 : index
    %90 = vector.load %arg1[%c408, %c0_46] : memref<520x48xf32, #tpu.memory_space<vmem>>, vector<8x16xf32>
    %cst_47 = arith.constant dense<0.000000e+00> : vector<16x16xf32>
    %91 = tpu.matmul %87, %90, %cst_47 {dimension_numbers = #tpu.dot_dimension_numbers<[1], [0], [0], [1], [0, 0, 1, 1], [], []>} : vector<16x8xf32>, vector<8x16xf32>, vector<16x16xf32> -> vector<16x16xf32>
    %c416 = arith.constant 416 : index
    %c0_48 = arith.constant 0 : index
    %92 = vector.load %arg1[%c416, %c0_48] : memref<520x48xf32, #tpu.memory_space<vmem>>, vector<8x16xf32>
    %cst_49 = arith.constant dense<0.000000e+00> : vector<16x16xf32>
    %93 = tpu.matmul %87, %92, %cst_49 {dimension_numbers = #tpu.dot_dimension_numbers<[1], [0], [0], [1], [0, 0, 1, 1], [], []>} : vector<16x8xf32>, vector<8x16xf32>, vector<16x16xf32> -> vector<16x16xf32>
    %94 = tpu.concatenate %89, %91, %93 in 0 : vector<16x16xf32>, vector<16x16xf32>, vector<16x16xf32> -> vector<48x16xf32>
    %c424 = arith.constant 424 : index
    %c0_50 = arith.constant 0 : index
    %95 = vector.load %arg1[%c424, %c0_50] : memref<520x48xf32, #tpu.memory_space<vmem>>, vector<16x48xf32>
    %cst_51 = arith.constant dense<0.000000e+00> : vector<16x16xf32>
    %96 = tpu.matmul %95, %94, %cst_51 {dimension_numbers = #tpu.dot_dimension_numbers<[1], [0], [0], [1], [0, 0, 1, 1], [], []>} : vector<16x48xf32>, vector<48x16xf32>, vector<16x16xf32> -> vector<16x16xf32>
    %c240 = arith.constant 240 : index
    %c0_52 = arith.constant 0 : index
    %97 = vector.load %arg2[%c240, %c0_52] : memref<304x1xf32, #tpu.memory_space<vmem>>, vector<16x1xf32>
    %98 = vector.broadcast %97 : vector<16x1xf32> to vector<16x16xf32>
    %99 = arith.addf %96, %98 : vector<16x16xf32>
    %cst_53 = arith.constant 0.000000e+00 : f32
    %100 = vector.broadcast %cst_53 : f32 to vector<16x16xf32>
    %101 = arith.maximumf %99, %100 : vector<16x16xf32>
    %cst_54 = arith.constant dense<0.000000e+00> : vector<16xf32>
    %102 = vector.multi_reduction <add>, %101, %cst_54 [1] : vector<16x16xf32> to vector<16xf32>
    %103 = vector.shape_cast %102 : vector<16xf32> to vector<16x1xf32>
    %104 = arith.mulf %101, %101 : vector<16x16xf32>
    %cst_55 = arith.constant dense<0.000000e+00> : vector<16xf32>
    %105 = vector.multi_reduction <add>, %104, %cst_55 [1] : vector<16x16xf32> to vector<16xf32>
    %106 = vector.shape_cast %105 : vector<16xf32> to vector<16x1xf32>
    %cst_56 = arith.constant 6.250000e-02 : f32
    %107 = vector.broadcast %cst_56 : f32 to vector<16x1xf32>
    %108 = arith.mulf %103, %107 : vector<16x1xf32>
    %109 = arith.mulf %103, %108 : vector<16x1xf32>
    %110 = arith.subf %106, %109 : vector<16x1xf32>
    %cst_57 = arith.constant 0.0666666701 : f32
    %111 = vector.broadcast %cst_57 : f32 to vector<16x1xf32>
    %112 = arith.mulf %110, %111 : vector<16x1xf32>
    %113 = vector.extract_strided_slice %44 {offsets = [64, 0], sizes = [16, 1], strides = [1, 1]} : vector<128x1xf32> to vector<16x1xf32>
    %114 = vector.extract_strided_slice %44 {offsets = [80, 0], sizes = [16, 1], strides = [1, 1]} : vector<128x1xf32> to vector<16x1xf32>
    %115 = vector.broadcast %108 : vector<16x1xf32> to vector<16x16xf32>
    %116 = arith.subf %101, %115 : vector<16x16xf32>
    %cst_58 = arith.constant 9.99999993E-9 : f32
    %117 = vector.broadcast %cst_58 : f32 to vector<16x1xf32>
    %118 = arith.addf %112, %117 : vector<16x1xf32>
    %119 = math.rsqrt %118 : vector<16x1xf32>
    %120 = vector.broadcast %119 : vector<16x1xf32> to vector<16x16xf32>
    %121 = arith.mulf %116, %120 : vector<16x16xf32>
    %122 = vector.broadcast %113 : vector<16x1xf32> to vector<16x16xf32>
    %123 = arith.mulf %122, %121 : vector<16x16xf32>
    %124 = vector.broadcast %114 : vector<16x1xf32> to vector<16x16xf32>
    %125 = arith.addf %123, %124 : vector<16x16xf32>
    %c440 = arith.constant 440 : index
    %c0_59 = arith.constant 0 : index
    %126 = vector.load %arg1[%c440, %c0_59] : memref<520x48xf32, #tpu.memory_space<vmem>>, vector<16x16xf32>
    %cst_60 = arith.constant dense<0.000000e+00> : vector<16x16xf32>
    %127 = tpu.matmul %125, %126, %cst_60 {dimension_numbers = #tpu.dot_dimension_numbers<[1], [0], [0], [1], [0, 0, 1, 1], [], []>} : vector<16x16xf32>, vector<16x16xf32>, vector<16x16xf32> -> vector<16x16xf32>
    %c456 = arith.constant 456 : index
    %c0_61 = arith.constant 0 : index
    %128 = vector.load %arg1[%c456, %c0_61] : memref<520x48xf32, #tpu.memory_space<vmem>>, vector<16x16xf32>
    %cst_62 = arith.constant dense<0.000000e+00> : vector<16x16xf32>
    %129 = tpu.matmul %125, %128, %cst_62 {dimension_numbers = #tpu.dot_dimension_numbers<[1], [0], [0], [1], [0, 0, 1, 1], [], []>} : vector<16x16xf32>, vector<16x16xf32>, vector<16x16xf32> -> vector<16x16xf32>
    %130 = tpu.concatenate %127, %125, %129 in 0 : vector<16x16xf32>, vector<16x16xf32>, vector<16x16xf32> -> vector<48x16xf32>
    %c472 = arith.constant 472 : index
    %c0_63 = arith.constant 0 : index
    %131 = vector.load %arg1[%c472, %c0_63] : memref<520x48xf32, #tpu.memory_space<vmem>>, vector<16x48xf32>
    %cst_64 = arith.constant dense<0.000000e+00> : vector<16x16xf32>
    %132 = tpu.matmul %131, %130, %cst_64 {dimension_numbers = #tpu.dot_dimension_numbers<[1], [0], [0], [1], [0, 0, 1, 1], [], []>} : vector<16x48xf32>, vector<48x16xf32>, vector<16x16xf32> -> vector<16x16xf32>
    %c256 = arith.constant 256 : index
    %c0_65 = arith.constant 0 : index
    %133 = vector.load %arg2[%c256, %c0_65] : memref<304x1xf32, #tpu.memory_space<vmem>>, vector<16x1xf32>
    %134 = vector.broadcast %133 : vector<16x1xf32> to vector<16x16xf32>
    %135 = arith.addf %132, %134 : vector<16x16xf32>
    %cst_66 = arith.constant 0.000000e+00 : f32
    %136 = vector.broadcast %cst_66 : f32 to vector<16x16xf32>
    %137 = arith.maximumf %135, %136 : vector<16x16xf32>
    %cst_67 = arith.constant dense<0.000000e+00> : vector<16xf32>
    %138 = vector.multi_reduction <add>, %137, %cst_67 [1] : vector<16x16xf32> to vector<16xf32>
    %139 = vector.shape_cast %138 : vector<16xf32> to vector<16x1xf32>
    %140 = arith.mulf %137, %137 : vector<16x16xf32>
    %cst_68 = arith.constant dense<0.000000e+00> : vector<16xf32>
    %141 = vector.multi_reduction <add>, %140, %cst_68 [1] : vector<16x16xf32> to vector<16xf32>
    %142 = vector.shape_cast %141 : vector<16xf32> to vector<16x1xf32>
    %cst_69 = arith.constant 6.250000e-02 : f32
    %143 = vector.broadcast %cst_69 : f32 to vector<16x1xf32>
    %144 = arith.mulf %139, %143 : vector<16x1xf32>
    %145 = arith.mulf %139, %144 : vector<16x1xf32>
    %146 = arith.subf %142, %145 : vector<16x1xf32>
    %cst_70 = arith.constant 0.0666666701 : f32
    %147 = vector.broadcast %cst_70 : f32 to vector<16x1xf32>
    %148 = arith.mulf %146, %147 : vector<16x1xf32>
    %149 = vector.extract_strided_slice %44 {offsets = [96, 0], sizes = [16, 1], strides = [1, 1]} : vector<128x1xf32> to vector<16x1xf32>
    %150 = vector.extract_strided_slice %44 {offsets = [112, 0], sizes = [16, 1], strides = [1, 1]} : vector<128x1xf32> to vector<16x1xf32>
    %151 = vector.broadcast %144 : vector<16x1xf32> to vector<16x16xf32>
    %152 = arith.subf %137, %151 : vector<16x16xf32>
    %cst_71 = arith.constant 9.99999993E-9 : f32
    %153 = vector.broadcast %cst_71 : f32 to vector<16x1xf32>
    %154 = arith.addf %148, %153 : vector<16x1xf32>
    %155 = math.rsqrt %154 : vector<16x1xf32>
    %156 = vector.broadcast %155 : vector<16x1xf32> to vector<16x16xf32>
    %157 = arith.mulf %152, %156 : vector<16x16xf32>
    %158 = vector.broadcast %149 : vector<16x1xf32> to vector<16x16xf32>
    %159 = arith.mulf %158, %157 : vector<16x16xf32>
    %160 = vector.broadcast %150 : vector<16x1xf32> to vector<16x16xf32>
    %161 = arith.addf %159, %160 : vector<16x16xf32>
    %c488 = arith.constant 488 : index
    %c0_72 = arith.constant 0 : index
    %162 = vector.load %arg1[%c488, %c0_72] : memref<520x48xf32, #tpu.memory_space<vmem>>, vector<12x16xf32>
    %cst_73 = arith.constant dense<0.000000e+00> : vector<12x16xf32>
    %163 = tpu.matmul %162, %161, %cst_73 {dimension_numbers = #tpu.dot_dimension_numbers<[1], [0], [0], [1], [0, 0, 1, 1], [], []>} : vector<12x16xf32>, vector<16x16xf32>, vector<12x16xf32> -> vector<12x16xf32>
    %c272 = arith.constant 272 : index
    %c0_74 = arith.constant 0 : index
    %164 = vector.load %arg2[%c272, %c0_74] : memref<304x1xf32, #tpu.memory_space<vmem>>, vector<12x1xf32>
    %165 = vector.broadcast %164 : vector<12x1xf32> to vector<12x16xf32>
    %166 = arith.addf %163, %165 : vector<12x16xf32>
    %c504 = arith.constant 504 : index
    %c0_75 = arith.constant 0 : index
    %167 = vector.load %arg1[%c504, %c0_75] : memref<520x48xf32, #tpu.memory_space<vmem>>, vector<16x16xf32>
    %cst_76 = arith.constant dense<0.000000e+00> : vector<12x16xf32>
    %168 = tpu.matmul %166, %167, %cst_76 {dimension_numbers = #tpu.dot_dimension_numbers<[1], [0], [0], [1], [0, 0, 1, 1], [], []>} : vector<12x16xf32>, vector<16x16xf32>, vector<12x16xf32> -> vector<12x16xf32>
    %c288 = arith.constant 288 : index
    %c0_77 = arith.constant 0 : index
    %169 = vector.load %arg2[%c288, %c0_77] : memref<304x1xf32, #tpu.memory_space<vmem>>, vector<12x1xf32>
    %170 = arith.subf %168, %166 : vector<12x16xf32>
    %171 = vector.broadcast %169 : vector<12x1xf32> to vector<12x16xf32>
    %172 = arith.mulf %171, %170 : vector<12x16xf32>
    %173 = arith.addf %166, %172 : vector<12x16xf32>
    %c0_78 = arith.constant 0 : index
    %c0_79 = arith.constant 0 : index
    %174 = vector.load %arg3[%c0_78, %c0_79] : memref<12x16xf32, #tpu.memory_space<vmem>>, vector<12x16xf32>
    tpu.vector_store %arg3[%c0_78, %c0_79], %173 {strides = array<i32>} : memref<12x16xf32, #tpu.memory_space<vmem>>, vector<12x16xf32>,
    return
  }
}

</mosaic_0001>

<llo_original>
// kernel: stylenet_forward.1
$region0: #{stylenet_forward.1}
  #allocation0 [shape = 'u32[]', space=smem, size = 0x4, offset = 0x4, fixed_abs, tag = 'smem constant byte address 0x4 - core index']
  #allocation1 [shape = 'u32[144,128]{1,0:T(1,128)}', space=vmem, size = 0x12000, scoped, tag = 'internal scratch']
  %s0 = inlined_call_operand.vmem [shape: f32[48,1], index: 0, kind: input, shape index: {}]
  %s1 = inlined_call_operand.vmem [shape: f32[520,48], index: 1, kind: input, shape index: {}]
  %s2 = inlined_call_operand.vmem [shape: f32[304,1], index: 2, kind: input, shape index: {}]
  %s3 = inlined_call_operand.vmem [shape: f32[12,16], index: 3, kind: output, shape index: {}]
  %s4 = sld [smem:[#allocation0]]
  $region22: #{stylenet_forward.1} parent=0
    _
  %s6 = ssub.s32 1, %s4
  %s7 = scalar_select 0, %s6, %s4
  // Predicated region
  $region2: #{stylenet_forward.1} parent=0 // pred_check
    _
  $region3: #{stylenet_forward.1} parent=0 // pred_check_branch
    %9 = sbr.rel (0) target = $region5
  $region4: #{stylenet_forward.1} parent=0 // pred_region
    _
  $region5: #{stylenet_forward.1} parent=0 // pred_fallthru
    _
  // Predicated region
  $region6: #{stylenet_forward.1} parent=0 // pred_check
    _
  $region7: #{stylenet_forward.1} parent=0 // pred_check_branch
    %11 = sbr.rel (0) target = $region9
  $region8: #{stylenet_forward.1} parent=0 // pred_region
    _
  $region9: #{stylenet_forward.1} parent=0 // pred_fallthru
    _
  // Predicated region
  $region10: #{stylenet_forward.1} parent=0 // pred_check
    _
  $region11: #{stylenet_forward.1} parent=0 // pred_check_branch
    %13 = sbr.rel (0) target = $region13
  $region12: #{stylenet_forward.1} parent=0 // pred_region
    _
  $region13: #{stylenet_forward.1} parent=0 // pred_fallthru
    _
  %v14 = vld [vmem:[%s0] sm:$0xff]
  %v15 = vld [vmem:[%s0 + $0x8] sm:$0xff]
  %v16 = vld [vmem:[%s0 + $0x10] sm:$0xff]
  %v17 = vld [vmem:[%s0 + $0x18] sm:$0xff]
  %v18 = vld [vmem:[%s0 + $0x20] sm:$0xff]
  %v19 = vld [vmem:[%s0 + $0x28] sm:$0xff]
  %v20 = vld [vmem:[%s1] sm:$0xff]
  %v21 = vld [vmem:[%s1 + $0x8] sm:$0xff]
  %v22 = vld [vmem:[%s1 + $0x10] sm:$0xff]
  %v23 = vld [vmem:[%s1 + $0x18] sm:$0xff]
  %v24 = vld [vmem:[%s2] sm:$0xff]
  %v25 = vld [vmem:[%s2 + $0x8] sm:$0xff]
  %v26 = vld [vmem:[%s2 + $0x10] sm:$0xff]
  %v27 = vld [vmem:[%s2 + $0x18] sm:$0xff]
  %vm28 = vcmask 130048
  %v30 = vsel %vm28, %v20, 0
  %v33 = vsel %vm28, %v21, 0
  %v36 = vsel %vm28, %v22, 0
  %v39 = vsel %vm28, %v23, 0
  %41 = vmatprep.subr.mxu0 0.0
  %42 = vmatpush1.msra.mxu0 %v14
  %43 = vmatprep.subr.mxu0 0.0
  %44 = vmatpush1.msra.mxu0 %v15
  %45 = vmatprep.subr.mxu0 0.0
  %46 = vmatpush1.msra.mxu0 0.0
  %47 = vmatprep.subr.mxu0 0.0
  %48 = vmatpush1.msra.mxu0 0.0
  %49 = vmatprep.subr.mxu0 0.0
  %50 = vmatpush1.msra.mxu0 0.0
  %51 = vmatprep.subr.mxu0 0.0
  %52 = vmatpush1.msra.mxu0 0.0
  %53 = vmatprep.subr.mxu0 0.0
  %54 = vmatpush1.msra.mxu0 0.0
  %55 = vmatprep.subr.mxu0 0.0
  %56 = vmatpush1.msra.mxu0 0.0
  %57 = vmatprep.subr.mxu0 0.0
  %58 = vmatpush1.msra.mxu0 0.0
  %59 = vmatprep.subr.mxu0 0.0
  %60 = vmatpush1.msra.mxu0 0.0
  %61 = vmatprep.subr.mxu0 0.0
  %62 = vmatpush1.msra.mxu0 0.0
  %63 = vmatprep.subr.mxu0 0.0
  %64 = vmatpush1.msra.mxu0 0.0
  %65 = vmatprep.subr.mxu0 0.0
  %66 = vmatpush1.msra.mxu0 0.0
  %67 = vmatprep.subr.mxu0 0.0
  %68 = vmatpush1.msra.mxu0 0.0
  %69 = vmatprep.subr.mxu0 0.0
  %70 = vmatpush1.msra.mxu0 0.0
  %71 = vmatprep.subr.mxu0 0.0
  %72 = vmatpush1.msra.mxu0 0.0
  %73 = vmatprep.subr.mxu0 0.0
  %74 = vmatpush1.msra.mxu0 0.0
  %75 = vmatprep.subr.mxu0 0.0
  %76 = vmatpush1.msra.mxu0 0.0
  %77 = vmatprep.subr.mxu0 0.0
  %78 = vmatpush1.msra.mxu0 0.0
  %79 = vmatprep.subr.mxu0 0.0
  %80 = vmatpush1.msra.mxu0 0.0
  %81 = vmatprep.subr.mxu0 0.0
  %82 = vmatpush1.msra.mxu0 0.0
  %83 = vmatprep.subr.mxu0 0.0
  %84 = vmatpush1.msra.mxu0 0.0
  %85 = vmatprep.subr.mxu0 0.0
  %86 = vmatpush1.msra.mxu0 0.0
  %87 = vmatprep.subr.mxu0 0.0
  %88 = vmatpush1.msra.mxu0 0.0
  %89 = vmatprep.subr.mxu0 0.0
  %90 = vmatpush1.msra.mxu0 0.0
  %91 = vmatprep.subr.mxu0 0.0
  %92 = vmatpush1.msra.mxu0 0.0
  %93 = vmatprep.subr.mxu0 0.0
  %94 = vmatpush1.msra.mxu0 0.0
  %95 = vmatprep.subr.mxu0 0.0
  %96 = vmatpush1.msra.mxu0 0.0
  %97 = vmatprep.subr.mxu0 0.0
  %98 = vmatpush1.msra.mxu0 0.0
  %99 = vmatprep.subr.mxu0 0.0
  %100 = vmatpush1.msra.mxu0 0.0
  %101 = vmatprep.subr.mxu0 0.0
  %102 = vmatpush1.msra.mxu0 0.0
  %103 = vmatprep.subr.mxu0 0.0
  %104 = vmatpush1.msra.mxu0 0.0
  %105 = vmatprep.mubr.f32.mxu0 0.0
  %106 = vmatmul.mubr.f32.gmra.mrb[0].mxu0 %v30
  %v107 = vpop.f32.mrb[0].mxu0
  %v108 = vadd.f32 %v24, %v107
  %v109 = vpop.f32.mrb[0].mxu0
  %110 = vmatprep.mubr.f32.mxu0 0.0
  %111 = vmatmul.mubr.f32.gmra.mrb[0].mxu0 %v33
  %v112 = vpop.f32.mrb[0].mxu0
  %v113 = vadd.f32 %v25, %v112
  %v114 = vpop.f32.mrb[0].mxu0
  %115 = vmatprep.mubr.f32.mxu0 0.0
  %116 = vmatmul.mubr.f32.gmra.mrb[0].mxu0 %v36
  %v117 = vpop.f32.mrb[0].mxu0
  %v118 = vadd.f32 %v26, %v117
  %v119 = vpop.f32.mrb[0].mxu0
  %120 = vmatprep.mubr.f32.mxu0 0.0
  %121 = vmatmul.mubr.f32.gmra.mrb[0].mxu0 %v39
  %v122 = vpop.f32.mrb[0].mxu0
  %v123 = vadd.f32 %v27, %v122
  %v124 = vpop.f32.mrb[0].mxu0
  %125 = vdwg.mxu0
  %vm126 = vcmp.gt.f32.partialorder %v108, 0.0
  %vm127 = vcmp.gt.f32.partialorder %v113, 0.0
  %vm128 = vcmp.gt.f32.partialorder %v118, 0.0
  %vm129 = vcmp.gt.f32.partialorder %v123, 0.0
  %v130 = vmin.f32 %v108, 0.0
  %v131 = vmin.f32 %v113, 0.0
  %v132 = vmin.f32 %v118, 0.0
  %v133 = vmin.f32 %v123, 0.0
  %v134 = vmul.f32 %v130, 1.442695
  %v135 = vpow.pop %v134
  %v136 = vmul.f32 %v131, 1.442695
  %v137 = vpow.pop %v136
  %v138 = vmul.f32 %v132, 1.442695
  %v139 = vpow.pop %v138
  %v140 = vmul.f32 %v133, 1.442695
  %v141 = vpow.pop %v140
  %v142 = vsub.f32 %v135, 1.0
  %v143 = vsub.f32 %v137, 1.0
  %v144 = vsub.f32 %v139, 1.0
  %v145 = vsub.f32 %v141, 1.0
  %v146 = vsel %vm126, %v108, %v142
  %v147 = vsel %vm127, %v113, %v143
  %v148 = vsel %vm128, %v118, %v144
  %v149 = vsel %vm129, %v123, %v145
  %v150 = vld [vmem:[%s1 + $0x20] sm:$0xff]
  %v151 = vld [vmem:[%s1 + $0x28] sm:$0xff]
  %v152 = vld [vmem:[%s1 + $0x30] sm:$0xff]
  %v153 = vld [vmem:[%s1 + $0x38] sm:$0xff]
  %v154 = vld [vmem:[%s2 + $0x20] sm:$0xff]
  %v155 = vld [vmem:[%s2 + $0x28] sm:$0xff]
  %v156 = vld [vmem:[%s2 + $0x30] sm:$0xff]
  %v157 = vld [vmem:[%s2 + $0x38] sm:$0xff]
  %vm158 = vcmask 261120
  %v160 = vsel %vm158, %v150, 0
  %v163 = vsel %vm158, %v151, 0
  %v166 = vsel %vm158, %v152, 0
  %v169 = vsel %vm158, %v153, 0
  %171 = vmatprep.subr.mxu0 0.0
  %172 = vmatpush1.msra.mxu0 %v146
  %173 = vmatprep.subr.mxu0 0.0
  %174 = vmatpush1.msra.mxu0 %v147
  %175 = vmatprep.subr.mxu0 0.0
  %176 = vmatpush1.msra.mxu0 %v148
  %177 = vmatprep.subr.mxu0 0.0
  %178 = vmatpush1.msra.mxu0 %v149
  %179 = vmatprep.subr.mxu0 0.0
  %180 = vmatpush1.msra.mxu0 0.0
  %181 = vmatprep.subr.mxu0 0.0
  %182 = vmatpush1.msra.mxu0 0.0
  %183 = vmatprep.subr.mxu0 0.0
  %184 = vmatpush1.msra.mxu0 0.0
  %185 = vmatprep.subr.mxu0 0.0
  %186 = vmatpush1.msra.mxu0 0.0
  %187 = vmatprep.subr.mxu0 0.0
  %188 = vmatpush1.msra.mxu0 0.0
  %189 = vmatprep.subr.mxu0 0.0
  %190 = vmatpush1.msra.mxu0 0.0
  %191 = vmatprep.subr.mxu0 0.0
  %192 = vmatpush1.msra.mxu0 0.0
  %193 = vmatprep.subr.mxu0 0.0
  %194 = vmatpush1.msra.mxu0 0.0
  %195 = vmatprep.subr.mxu0 0.0
  %196 = vmatpush1.msra.mxu0 0.0
  %197 = vmatprep.subr.mxu0 0.0
  %198 = vmatpush1.msra.mxu0 0.0
  %199 = vmatprep.subr.mxu0 0.0
  %200 = vmatpush1.msra.mxu0 0.0
  %201 = vmatprep.subr.mxu0 0.0
  %202 = vmatpush1.msra.mxu0 0.0
  %203 = vmatprep.subr.mxu0 0.0
  %204 = vmatpush1.msra.mxu0 0.0
  %205 = vmatprep.subr.mxu0 0.0
  %206 = vmatpush1.msra.mxu0 0.0
  %207 = vmatprep.subr.mxu0 0.0
  %208 = vmatpush1.msra.mxu0 0.0
  %209 = vmatprep.subr.mxu0 0.0
  %210 = vmatpush1.msra.mxu0 0.0
  %211 = vmatprep.subr.mxu0 0.0
  %212 = vmatpush1.msra.mxu0 0.0
  %213 = vmatprep.subr.mxu0 0.0
  %214 = vmatpush1.msra.mxu0 0.0
  %215 = vmatprep.subr.mxu0 0.0
  %216 = vmatpush1.msra.mxu0 0.0
  %217 = vmatprep.subr.mxu0 0.0
  %218 = vmatpush1.msra.mxu0 0.0
  %219 = vmatprep.subr.mxu0 0.0
  %220 = vmatpush1.msra.mxu0 0.0
  %221 = vmatprep.subr.mxu0 0.0
  %222 = vmatpush1.msra.mxu0 0.0
  %223 = vmatprep.subr.mxu0 0.0
  %224 = vmatpush1.msra.mxu0 0.0
  %225 = vmatprep.subr.mxu0 0.0
  %226 = vmatpush1.msra.mxu0 0.0
  %227 = vmatprep.subr.mxu0 0.0
  %228 = vmatpush1.msra.mxu0 0.0
  %229 = vmatprep.subr.mxu0 0.0
  %230 = vmatpush1.msra.mxu0 0.0
  %231 = vmatprep.subr.mxu0 0.0
  %232 = vmatpush1.msra.mxu0 0.0
  %233 = vmatprep.subr.mxu0 0.0
  %234 = vmatpush1.msra.mxu0 0.0
  %235 = vmatprep.mubr.f32.mxu0 0.0
  %236 = vmatmul.mubr.f32.gmra.mrb[0].mxu0 %v160
  %v237 = vpop.f32.mrb[0].mxu0
  %v238 = vadd.f32 %v154, %v237
  %v239 = vpop.f32.mrb[0].mxu0
  %240 = vmatprep.mubr.f32.mxu0 0.0
  %241 = vmatmul.mubr.f32.gmra.mrb[0].mxu0 %v163
  %v242 = vpop.f32.mrb[0].mxu0
  %v243 = vadd.f32 %v155, %v242
  %v244 = vpop.f32.mrb[0].mxu0
  %245 = vmatprep.mubr.f32.mxu0 0.0
  %246 = vmatmul.mubr.f32.gmra.mrb[0].mxu0 %v166
  %v247 = vpop.f32.mrb[0].mxu0
  %v248 = vadd.f32 %v156, %v247
  %v249 = vpop.f32.mrb[0].mxu0
  %250 = vmatprep.mubr.f32.mxu0 0.0
  %251 = vmatmul.mubr.f32.gmra.mrb[0].mxu0 %v169
  %v252 = vpop.f32.mrb[0].mxu0
  %v253 = vadd.f32 %v157, %v252
  %v254 = vpop.f32.mrb[0].mxu0
  %255 = vdwg.mxu0
  %vm256 = vcmp.gt.f32.partialorder %v238, 0.0
  %vm257 = vcmp.gt.f32.partialorder %v243, 0.0
  %vm258 = vcmp.gt.f32.partialorder %v248, 0.0
  %vm259 = vcmp.gt.f32.partialorder %v253, 0.0
  %v260 = vmin.f32 %v238, 0.0
  %v261 = vmin.f32 %v243, 0.0
  %v262 = vmin.f32 %v248, 0.0
  %v263 = vmin.f32 %v253, 0.0
  %v264 = vmul.f32 %v260, 1.442695
  %v265 = vpow.pop %v264
  %v266 = vmul.f32 %v261, 1.442695
  %v267 = vpow.pop %v266
  %v268 = vmul.f32 %v262, 1.442695
  %v269 = vpow.pop %v268
  %v270 = vmul.f32 %v263, 1.442695
  %v271 = vpow.pop %v270
  %v272 = vsub.f32 %v265, 1.0
  %v273 = vsub.f32 %v267, 1.0
  %v274 = vsub.f32 %v269, 1.0
  %v275 = vsub.f32 %v271, 1.0
  %v276 = vsel %vm256, %v238, %v272
  %v277 = vsel %vm257, %v243, %v273
  %v278 = vsel %vm258, %v248, %v274
  %v279 = vsel %vm259, %v253, %v275
  %v280 = vld [vmem:[%s1 + $0x40] sm:$0xff]
  %v281 = vld [vmem:[%s1 + $0x48] sm:$0xff]
  %v282 = vld [vmem:[%s1 + $0x50] sm:$0xff]
  %v283 = vld [vmem:[%s1 + $0x58] sm:$0xff]
  %v284 = vld [vmem:[%s2 + $0x40] sm:$0xff]
  %v285 = vld [vmem:[%s2 + $0x48] sm:$0xff]
  %v286 = vld [vmem:[%s2 + $0x50] sm:$0xff]
  %v287 = vld [vmem:[%s2 + $0x58] sm:$0xff]
  %v289 = vsel %vm158, %v280, 0
  %v292 = vsel %vm158, %v281, 0
  %v295 = vsel %vm158, %v282, 0
  %v298 = vsel %vm158, %v283, 0
  %300 = vmatprep.subr.mxu0 0.0
  %301 = vmatpush1.msra.mxu0 %v276
  %302 = vmatprep.subr.mxu0 0.0
  %303 = vmatpush1.msra.mxu0 %v277
  %304 = vmatprep.subr.mxu0 0.0
  %305 = vmatpush1.msra.mxu0 %v278
  %306 = vmatprep.subr.mxu0 0.0
  %307 = vmatpush1.msra.mxu0 %v279
  %308 = vmatprep.subr.mxu0 0.0
  %309 = vmatpush1.msra.mxu0 0.0
  %310 = vmatprep.subr.mxu0 0.0
  %311 = vmatpush1.msra.mxu0 0.0
  %312 = vmatprep.subr.mxu0 0.0
  %313 = vmatpush1.msra.mxu0 0.0
  %314 = vmatprep.subr.mxu0 0.0
  %315 = vmatpush1.msra.mxu0 0.0
  %316 = vmatprep.subr.mxu0 0.0
  %317 = vmatpush1.msra.mxu0 0.0
  %318 = vmatprep.subr.mxu0 0.0
  %319 = vmatpush1.msra.mxu0 0.0
  %320 = vmatprep.subr.mxu0 0.0
  %321 = vmatpush1.msra.mxu0 0.0
  %322 = vmatprep.subr.mxu0 0.0
  %323 = vmatpush1.msra.mxu0 0.0
  %324 = vmatprep.subr.mxu0 0.0
  %325 = vmatpush1.msra.mxu0 0.0
  %326 = vmatprep.subr.mxu0 0.0
  %327 = vmatpush1.msra.mxu0 0.0
  %328 = vmatprep.subr.mxu0 0.0
  %329 = vmatpush1.msra.mxu0 0.0
  %330 = vmatprep.subr.mxu0 0.0
  %331 = vmatpush1.msra.mxu0 0.0
  %332 = vmatprep.subr.mxu0 0.0
  %333 = vmatpush1.msra.mxu0 0.0
  %334 = vmatprep.subr.mxu0 0.0
  %335 = vmatpush1.msra.mxu0 0.0
  %336 = vmatprep.subr.mxu0 0.0
  %337 = vmatpush1.msra.mxu0 0.0
  %338 = vmatprep.subr.mxu0 0.0
  %339 = vmatpush1.msra.mxu0 0.0
  %340 = vmatprep.subr.mxu0 0.0
  %341 = vmatpush1.msra.mxu0 0.0
  %342 = vmatprep.subr.mxu0 0.0
  %343 = vmatpush1.msra.mxu0 0.0
  %344 = vmatprep.subr.mxu0 0.0
  %345 = vmatpush1.msra.mxu0 0.0
  %346 = vmatprep.subr.mxu0 0.0
  %347 = vmatpush1.msra.mxu0 0.0
  %348 = vmatprep.subr.mxu0 0.0
  %349 = vmatpush1.msra.mxu0 0.0
  %350 = vmatprep.subr.mxu0 0.0
  %351 = vmatpush1.msra.mxu0 0.0
  %352 = vmatprep.subr.mxu0 0.0
  %353 = vmatpush1.msra.mxu0 0.0
  %354 = vmatprep.subr.mxu0 0.0
  %355 = vmatpush1.msra.mxu0 0.0
  %356 = vmatprep.subr.mxu0 0.0
  %357 = vmatpush1.msra.mxu0 0.0
  %358 = vmatprep.subr.mxu0 0.0
  %359 = vmatpush1.msra.mxu0 0.0
  %360 = vmatprep.subr.mxu0 0.0
  %361 = vmatpush1.msra.mxu0 0.0
  %362 = vmatprep.subr.mxu0 0.0
  %363 = vmatpush1.msra.mxu0 0.0
  %364 = vmatprep.mubr.f32.mxu0 0.0
  %365 = vmatmul.mubr.f32.gmra.mrb[0].mxu0 %v289
  %v366 = vpop.f32.mrb[0].mxu0
  %v367 = vadd.f32 %v284, %v366
  %v368 = vpop.f32.mrb[0].mxu0
  %369 = vmatprep.mubr.f32.mxu0 0.0
  %370 = vmatmul.mubr.f32.gmra.mrb[0].mxu0 %v292
  %v371 = vpop.f32.mrb[0].mxu0
  %v372 = vadd.f32 %v285, %v371
  %v373 = vpop.f32.mrb[0].mxu0
  %374 = vmatprep.mubr.f32.mxu0 0.0
  %375 = vmatmul.mubr.f32.gmra.mrb[0].mxu0 %v295
  %v376 = vpop.f32.mrb[0].mxu0
  %v377 = vadd.f32 %v286, %v376
  %v378 = vpop.f32.mrb[0].mxu0
  %379 = vmatprep.mubr.f32.mxu0 0.0
  %380 = vmatmul.mubr.f32.gmra.mrb[0].mxu0 %v298
  %v381 = vpop.f32.mrb[0].mxu0
  %v382 = vadd.f32 %v287, %v381
  %v383 = vpop.f32.mrb[0].mxu0
  %384 = vdwg.mxu0
  %vm385 = vcmp.gt.f32.partialorder %v367, 0.0
  %vm386 = vcmp.gt.f32.partialorder %v372, 0.0
  %vm387 = vcmp.gt.f32.partialorder %v377, 0.0
  %vm388 = vcmp.gt.f32.partialorder %v382, 0.0
  %v389 = vmin.f32 %v367, 0.0
  %v390 = vmin.f32 %v372, 0.0
  %v391 = vmin.f32 %v377, 0.0
  %v392 = vmin.f32 %v382, 0.0
  %v393 = vmul.f32 %v389, 1.442695
  %v394 = vpow.pop %v393
  %v395 = vmul.f32 %v390, 1.442695
  %v396 = vpow.pop %v395
  %v397 = vmul.f32 %v391, 1.442695
  %v398 = vpow.pop %v397
  %v399 = vmul.f32 %v392, 1.442695
  %v400 = vpow.pop %v399
  %v401 = vsub.f32 %v394, 1.0
  %v402 = vsub.f32 %v396, 1.0
  %v403 = vsub.f32 %v398, 1.0
  %v404 = vsub.f32 %v400, 1.0
  %v405 = vsel %vm385, %v367, %v401
  %v406 = vsel %vm386, %v372, %v402
  %v407 = vsel %vm387, %v377, %v403
  %v408 = vsel %vm388, %v382, %v404
  %v409 = vld [vmem:[%s1 + $0x60] sm:$0xff]
  %v410 = vld [vmem:[%s1 + $0x68] sm:$0xff]
  %v411 = vld [vmem:[%s1 + $0x70] sm:$0xff]
  %v412 = vld [vmem:[%s1 + $0x78] sm:$0xff]
  %v413 = vld [vmem:[%s1 + $0x80] sm:$0xff]
  %v414 = vld [vmem:[%s1 + $0x88] sm:$0xff]
  %v415 = vld [vmem:[%s1 + $0x90] sm:$0xff]
  %v416 = vld [vmem:[%s1 + $0x98] sm:$0xff]
  %v417 = vld [vmem:[%s1 + $0xa0] sm:$0xff]
  %v418 = vld [vmem:[%s1 + $0xa8] sm:$0xff]
  %v419 = vld [vmem:[%s1 + $0xb0] sm:$0xff]
  %v420 = vld [vmem:[%s1 + $0xb8] sm:$0xff]
  %v421 = vld [vmem:[%s1 + $0xc0] sm:$0xff]
  %v422 = vld [vmem:[%s1 + $0xc8] sm:$0xff]
  %v423 = vld [vmem:[%s1 + $0xd0] sm:$0xff]
  %v424 = vld [vmem:[%s1 + $0xd8] sm:$0xff]
  %v425 = vld [vmem:[%s1 + $0xe0] sm:$0xff]
  %v426 = vld [vmem:[%s1 + $0xe8] sm:$0xff]
  %v427 = vld [vmem:[%s1 + $0xf0] sm:$0xff]
  %v428 = vld [vmem:[%s1 + $0xf8] sm:$0xff]
  %v429 = vld [vmem:[%s1 + $0x100] sm:$0xff]
  %v430 = vld [vmem:[%s1 + $0x108] sm:$0xff]
  %v431 = vld [vmem:[%s1 + $0x110] sm:$0xff]
  %v432 = vld [vmem:[%s1 + $0x118] sm:$0xff]
  %v433 = vld [vmem:[%s1 + $0x120] sm:$0xff]
  %v434 = vld [vmem:[%s1 + $0x128] sm:$0xff]
  %v435 = vld [vmem:[%s1 + $0x130] sm:$0xff]
  %v436 = vld [vmem:[%s1 + $0x138] sm:$0xff]
  %v437 = vld [vmem:[%s1 + $0x140] sm:$0xff]
  %v438 = vld [vmem:[%s1 + $0x148] sm:$0xff]
  %v439 = vld [vmem:[%s1 + $0x150] sm:$0xff]
  %v440 = vld [vmem:[%s1 + $0x158] sm:$0xff]
  %v442 = vsel %vm158, %v425, 0
  %v445 = vsel %vm158, %v426, 0
  %v448 = vsel %vm158, %v427, 0
  %v451 = vsel %vm158, %v428, 0
  %v454 = vsel %vm158, %v429, 0
  %v457 = vsel %vm158, %v430, 0
  %v460 = vsel %vm158, %v431, 0
  %v463 = vsel %vm158, %v432, 0
  %v466 = vsel %vm158, %v433, 0
  %v469 = vsel %vm158, %v434, 0
  %v472 = vsel %vm158, %v435, 0
  %v475 = vsel %vm158, %v436, 0
  %v478 = vsel %vm158, %v437, 0
  %v481 = vsel %vm158, %v438, 0
  %v484 = vsel %vm158, %v439, 0
  %v487 = vsel %vm158, %v440, 0
  %489 = vmatprep.subr.mxu0 0.0
  %490 = vmatpush1.msra.mxu0 %v16
  %491 = vmatprep.subr.mxu0 0.0
  %492 = vmatpush1.msra.mxu0 %v17
  %493 = vmatprep.subr.mxu0 0.0
  %494 = vmatpush1.msra.mxu0 %v18
  %495 = vmatprep.subr.mxu0 0.0
  %496 = vmatpush1.msra.mxu0 %v19
  %497 = vmatprep.subr.mxu0 0.0
  %498 = vmatpush1.msra.mxu0 0.0
  %499 = vmatprep.subr.mxu0 0.0
  %500 = vmatpush1.msra.mxu0 0.0
  %501 = vmatprep.subr.mxu0 0.0
  %502 = vmatpush1.msra.mxu0 0.0
  %503 = vmatprep.subr.mxu0 0.0
  %504 = vmatpush1.msra.mxu0 0.0
  %505 = vmatprep.subr.mxu0 0.0
  %506 = vmatpush1.msra.mxu0 0.0
  %507 = vmatprep.subr.mxu0 0.0
  %508 = vmatpush1.msra.mxu0 0.0
  %509 = vmatprep.subr.mxu0 0.0
  %510 = vmatpush1.msra.mxu0 0.0
  %511 = vmatprep.subr.mxu0 0.0
  %512 = vmatpush1.msra.mxu0 0.0
  %513 = vmatprep.subr.mxu0 0.0
  %514 = vmatpush1.msra.mxu0 0.0
  %515 = vmatprep.subr.mxu0 0.0
  %516 = vmatpush1.msra.mxu0 0.0
  %517 = vmatprep.subr.mxu0 0.0
  %518 = vmatpush1.msra.mxu0 0.0
  %519 = vmatprep.subr.mxu0 0.0
  %520 = vmatpush1.msra.mxu0 0.0
  %521 = vmatprep.subr.mxu0 0.0
  %522 = vmatpush1.msra.mxu0 0.0
  %523 = vmatprep.subr.mxu0 0.0
  %524 = vmatpush1.msra.mxu0 0.0
  %525 = vmatprep.subr.mxu0 0.0
  %526 = vmatpush1.msra.mxu0 0.0
  %527 = vmatprep.subr.mxu0 0.0
  %528 = vmatpush1.msra.mxu0 0.0
  %529 = vmatprep.subr.mxu0 0.0
  %530 = vmatpush1.msra.mxu0 0.0
  %531 = vmatprep.subr.mxu0 0.0
  %532 = vmatpush1.msra.mxu0 0.0
  %533 = vmatprep.subr.mxu0 0.0
  %534 = vmatpush1.msra.mxu0 0.0
  %535 = vmatprep.subr.mxu0 0.0
  %536 = vmatpush1.msra.mxu0 0.0
  %537 = vmatprep.subr.mxu0 0.0
  %538 = vmatpush1.msra.mxu0 0.0
  %539 = vmatprep.subr.mxu0 0.0
  %540 = vmatpush1.msra.mxu0 0.0
  %541 = vmatprep.subr.mxu0 0.0
  %542 = vmatpush1.msra.mxu0 0.0
  %543 = vmatprep.subr.mxu0 0.0
  %544 = vmatpush1.msra.mxu0 0.0
  %545 = vmatprep.subr.mxu0 0.0
  %546 = vmatpush1.msra.mxu0 0.0
  %547 = vmatprep.subr.mxu0 0.0
  %548 = vmatpush1.msra.mxu0 0.0
  %549 = vmatprep.subr.mxu0 0.0
  %550 = vmatpush1.msra.mxu0 0.0
  %551 = vmatprep.subr.mxu0 0.0
  %552 = vmatpush1.msra.mxu0 0.0
  %553 = vmatprep.mubr.f32.mxu0 0.0
  %554 = vmatmul.mubr.f32.gmra.mrb[0].mxu0 %v442
  %v555 = vpop.f32.mrb[0].mxu0
  %v556 = vadd.f32 0.0, %v555
  %v557 = vpop.f32.mrb[0].mxu0
  %558 = vmatprep.mubr.f32.mxu0 0.0
  %559 = vmatmul.mubr.f32.gmra.mrb[0].mxu0 %v445
  %v560 = vpop.f32.mrb[0].mxu0
  %v561 = vadd.f32 0.0, %v560
  %v562 = vpop.f32.mrb[0].mxu0
  %563 = vmatprep.mubr.f32.mxu0 0.0
  %564 = vmatmul.mubr.f32.gmra.mrb[0].mxu0 %v448
  %v565 = vpop.f32.mrb[0].mxu0
  %v566 = vadd.f32 0.0, %v565
  %v567 = vpop.f32.mrb[0].mxu0
  %568 = vmatprep.mubr.f32.mxu0 0.0
  %569 = vmatmul.mubr.f32.gmra.mrb[0].mxu0 %v451
  %v570 = vpop.f32.mrb[0].mxu0
  %v571 = vadd.f32 0.0, %v570
  %v572 = vpop.f32.mrb[0].mxu0
  %573 = vmatprep.mubr.f32.mxu0 0.0
  %574 = vmatmul.mubr.f32.gmra.mrb[0].mxu0 %v454
  %v575 = vpop.f32.mrb[0].mxu0
  %v576 = vadd.f32 0.0, %v575
  %v577 = vpop.f32.mrb[0].mxu0
  %578 = vmatprep.mubr.f32.mxu0 0.0
  %579 = vmatmul.mubr.f32.gmra.mrb[0].mxu0 %v457
  %v580 = vpop.f32.mrb[0].mxu0
  %v581 = vadd.f32 0.0, %v580
  %v582 = vpop.f32.mrb[0].mxu0
  %583 = vmatprep.mubr.f32.mxu0 0.0
  %584 = vmatmul.mubr.f32.gmra.mrb[0].mxu0 %v460
  %v585 = vpop.f32.mrb[0].mxu0
  %v586 = vadd.f32 0.0, %v585
  %v587 = vpop.f32.mrb[0].mxu0
  %588 = vmatprep.mubr.f32.mxu0 0.0
  %589 = vmatmul.mubr.f32.gmra.mrb[0].mxu0 %v463
  %v590 = vpop.f32.mrb[0].mxu0
  %v591 = vadd.f32 0.0, %v590
  %v592 = vpop.f32.mrb[0].mxu0
  %593 = vmatprep.mubr.f32.mxu0 0.0
  %594 = vmatmul.mubr.f32.gmra.mrb[0].mxu0 %v466
  %v595 = vpop.f32.mrb[0].mxu0
  %v596 = vadd.f32 0.0, %v595
  %v597 = vpop.f32.mrb[0].mxu0
  %598 = vmatprep.mubr.f32.mxu0 0.0
  %599 = vmatmul.mubr.f32.gmra.mrb[0].mxu0 %v469
  %v600 = vpop.f32.mrb[0].mxu0
  %v601 = vadd.f32 0.0, %v600
  %v602 = vpop.f32.mrb[0].mxu0
  %603 = vmatprep.mubr.f32.mxu0 0.0
  %604 = vmatmul.mubr.f32.gmra.mrb[0].mxu0 %v472
  %v605 = vpop.f32.mrb[0].mxu0
  %v606 = vadd.f32 0.0, %v605
  %v607 = vpop.f32.mrb[0].mxu0
  %608 = vmatprep.mubr.f32.mxu0 0.0
  %609 = vmatmul.mubr.f32.gmra.mrb[0].mxu0 %v475
  %v610 = vpop.f32.mrb[0].mxu0
  %v611 = vadd.f32 0.0, %v610
  %v612 = vpop.f32.mrb[0].mxu0
  %613 = vmatprep.mubr.f32.mxu0 0.0
  %614 = vmatmul.mubr.f32.gmra.mrb[0].mxu0 %v478
  %v615 = vpop.f32.mrb[0].mxu0
  %v616 = vadd.f32 0.0, %v615
  %v617 = vpop.f32.mrb[0].mxu0
  %618 = vmatprep.mubr.f32.mxu0 0.0
  %619 = vmatmul.mubr.f32.gmra.mrb[0].mxu0 %v481
  %v620 = vpop.f32.mrb[0].mxu0
  %v621 = vadd.f32 0.0, %v620
  %v622 = vpop.f32.mrb[0].mxu0
  %623 = vmatprep.mubr.f32.mxu0 0.0
  %624 = vmatmul.mubr.f32.gmra.mrb[0].mxu0 %v484
  %v625 = vpop.f32.mrb[0].mxu0
  %v626 = vadd.f32 0.0, %v625
  %v627 = vpop.f32.mrb[0].mxu0
  %628 = vmatprep.mubr.f32.mxu0 0.0
  %629 = vmatmul.mubr.f32.gmra.mrb[0].mxu0 %v487
  %v630 = vpop.f32.mrb[0].mxu0
  %v631 = vadd.f32 0.0, %v630
  %v632 = vpop.f32.mrb[0].mxu0
  %633 = vdwg.mxu0
  %v635 = vsel %vm158, %v409, 0
  %v638 = vsel %vm158, %v410, 0
  %v641 = vsel %vm158, %v411, 0
  %v644 = vsel %vm158, %v412, 0
  %v647 = vsel %vm158, %v413, 0
  %v650 = vsel %vm158, %v414, 0
  %v653 = vsel %vm158, %v415, 0
  %v656 = vsel %vm158, %v416, 0
  %v659 = vsel %vm158, %v417, 0
  %v662 = vsel %vm158, %v418, 0
  %v665 = vsel %vm158, %v419, 0
  %v668 = vsel %vm158, %v420, 0
  %v671 = vsel %vm158, %v421, 0
  %v674 = vsel %vm158, %v422, 0
  %v677 = vsel %vm158, %v423, 0
  %v680 = vsel %vm158, %v424, 0
  %682 = vmatprep.subr.mxu0 0.0
  %683 = vmatpush1.msra.mxu0 %v405
  %684 = vmatprep.subr.mxu0 0.0
  %685 = vmatpush1.msra.mxu0 %v406
  %686 = vmatprep.subr.mxu0 0.0
  %687 = vmatpush1.msra.mxu0 %v407
  %688 = vmatprep.subr.mxu0 0.0
  %689 = vmatpush1.msra.mxu0 %v408
  %690 = vmatprep.subr.mxu0 0.0
  %691 = vmatpush1.msra.mxu0 0.0
  %692 = vmatprep.subr.mxu0 0.0
  %693 = vmatpush1.msra.mxu0 0.0
  %694 = vmatprep.subr.mxu0 0.0
  %695 = vmatpush1.msra.mxu0 0.0
  %696 = vmatprep.subr.mxu0 0.0
  %697 = vmatpush1.msra.mxu0 0.0
  %698 = vmatprep.subr.mxu0 0.0
  %699 = vmatpush1.msra.mxu0 0.0
  %700 = vmatprep.subr.mxu0 0.0
  %701 = vmatpush1.msra.mxu0 0.0
  %702 = vmatprep.subr.mxu0 0.0
  %703 = vmatpush1.msra.mxu0 0.0
  %704 = vmatprep.subr.mxu0 0.0
  %705 = vmatpush1.msra.mxu0 0.0
  %706 = vmatprep.subr.mxu0 0.0
  %707 = vmatpush1.msra.mxu0 0.0
  %708 = vmatprep.subr.mxu0 0.0
  %709 = vmatpush1.msra.mxu0 0.0
  %710 = vmatprep.subr.mxu0 0.0
  %711 = vmatpush1.msra.mxu0 0.0
  %712 = vmatprep.subr.mxu0 0.0
  %713 = vmatpush1.msra.mxu0 0.0
  %714 = vmatprep.subr.mxu0 0.0
  %715 = vmatpush1.msra.mxu0 0.0
  %716 = vmatprep.subr.mxu0 0.0
  %717 = vmatpush1.msra.mxu0 0.0
  %718 = vmatprep.subr.mxu0 0.0
  %719 = vmatpush1.msra.mxu0 0.0
  %720 = vmatprep.subr.mxu0 0.0
  %721 = vmatpush1.msra.mxu0 0.0
  %722 = vmatprep.subr.mxu0 0.0
  %723 = vmatpush1.msra.mxu0 0.0
  %724 = vmatprep.subr.mxu0 0.0
  %725 = vmatpush1.msra.mxu0 0.0
  %726 = vmatprep.subr.mxu0 0.0
  %727 = vmatpush1.msra.mxu0 0.0
  %728 = vmatprep.subr.mxu0 0.0
  %729 = vmatpush1.msra.mxu0 0.0
  %730 = vmatprep.subr.mxu0 0.0
  %731 = vmatpush1.msra.mxu0 0.0
  %732 = vmatprep.subr.mxu0 0.0
  %733 = vmatpush1.msra.mxu0 0.0
  %734 = vmatprep.subr.mxu0 0.0
  %735 = vmatpush1.msra.mxu0 0.0
  %736 = vmatprep.subr.mxu0 0.0
  %737 = vmatpush1.msra.mxu0 0.0
  %738 = vmatprep.subr.mxu0 0.0
  %739 = vmatpush1.msra.mxu0 0.0
  %740 = vmatprep.subr.mxu0 0.0
  %741 = vmatpush1.msra.mxu0 0.0
  %742 = vmatprep.subr.mxu0 0.0
  %743 = vmatpush1.msra.mxu0 0.0
  %744 = vmatprep.subr.mxu0 0.0
  %745 = vmatpush1.msra.mxu0 0.0
  %746 = vmatprep.mubr.f32.mxu0 0.0
  %747 = vmatmul.mubr.f32.gmra.mrb[0].mxu0 %v635
  %v748 = vpop.f32.mrb[0].mxu0
  %v749 = vadd.f32 %v556, %v748
  %v750 = vpop.f32.mrb[0].mxu0
  %751 = vmatprep.mubr.f32.mxu0 0.0
  %752 = vmatmul.mubr.f32.gmra.mrb[0].mxu0 %v638
  %v753 = vpop.f32.mrb[0].mxu0
  %v754 = vadd.f32 %v561, %v753
  %v755 = vpop.f32.mrb[0].mxu0
  %756 = vmatprep.mubr.f32.mxu0 0.0
  %757 = vmatmul.mubr.f32.gmra.mrb[0].mxu0 %v641
  %v758 = vpop.f32.mrb[0].mxu0
  %v759 = vadd.f32 %v566, %v758
  %v760 = vpop.f32.mrb[0].mxu0
  %761 = vmatprep.mubr.f32.mxu0 0.0
  %762 = vmatmul.mubr.f32.gmra.mrb[0].mxu0 %v644
  %v763 = vpop.f32.mrb[0].mxu0
  %v764 = vadd.f32 %v571, %v763
  %v765 = vpop.f32.mrb[0].mxu0
  %766 = vmatprep.mubr.f32.mxu0 0.0
  %767 = vmatmul.mubr.f32.gmra.mrb[0].mxu0 %v647
  %v768 = vpop.f32.mrb[0].mxu0
  %v769 = vadd.f32 %v576, %v768
  %v770 = vpop.f32.mrb[0].mxu0
  %771 = vmatprep.mubr.f32.mxu0 0.0
  %772 = vmatmul.mubr.f32.gmra.mrb[0].mxu0 %v650
  %v773 = vpop.f32.mrb[0].mxu0
  %v774 = vadd.f32 %v581, %v773
  %v775 = vpop.f32.mrb[0].mxu0
  %776 = vmatprep.mubr.f32.mxu0 0.0
  %777 = vmatmul.mubr.f32.gmra.mrb[0].mxu0 %v653
  %v778 = vpop.f32.mrb[0].mxu0
  %v779 = vadd.f32 %v586, %v778
  %v780 = vpop.f32.mrb[0].mxu0
  %781 = vmatprep.mubr.f32.mxu0 0.0
  %782 = vmatmul.mubr.f32.gmra.mrb[0].mxu0 %v656
  %v783 = vpop.f32.mrb[0].mxu0
  %v784 = vadd.f32 %v591, %v783
  %v785 = vpop.f32.mrb[0].mxu0
  %786 = vmatprep.mubr.f32.mxu0 0.0
  %787 = vmatmul.mubr.f32.gmra.mrb[0].mxu0 %v659
  %v788 = vpop.f32.mrb[0].mxu0
  %v789 = vadd.f32 %v596, %v788
  %v790 = vpop.f32.mrb[0].mxu0
  %791 = vmatprep.mubr.f32.mxu0 0.0
  %792 = vmatmul.mubr.f32.gmra.mrb[0].mxu0 %v662
  %v793 = vpop.f32.mrb[0].mxu0
  %v794 = vadd.f32 %v601, %v793
  %v795 = vpop.f32.mrb[0].mxu0
  %796 = vmatprep.mubr.f32.mxu0 0.0
  %797 = vmatmul.mubr.f32.gmra.mrb[0].mxu0 %v665
  %v798 = vpop.f32.mrb[0].mxu0
  %v799 = vadd.f32 %v606, %v798
  %v800 = vpop.f32.mrb[0].mxu0
  %801 = vmatprep.mubr.f32.mxu0 0.0
  %802 = vmatmul.mubr.f32.gmra.mrb[0].mxu0 %v668
  %v803 = vpop.f32.mrb[0].mxu0
  %v804 = vadd.f32 %v611, %v803
  %v805 = vpop.f32.mrb[0].mxu0
  %806 = vmatprep.mubr.f32.mxu0 0.0
  %807 = vmatmul.mubr.f32.gmra.mrb[0].mxu0 %v671
  %v808 = vpop.f32.mrb[0].mxu0
  %v809 = vadd.f32 %v616, %v808
  %v810 = vpop.f32.mrb[0].mxu0
  %811 = vmatprep.mubr.f32.mxu0 0.0
  %812 = vmatmul.mubr.f32.gmra.mrb[0].mxu0 %v674
  %v813 = vpop.f32.mrb[0].mxu0
  %v814 = vadd.f32 %v621, %v813
  %v815 = vpop.f32.mrb[0].mxu0
  %816 = vmatprep.mubr.f32.mxu0 0.0
  %817 = vmatmul.mubr.f32.gmra.mrb[0].mxu0 %v677
  %v818 = vpop.f32.mrb[0].mxu0
  %v819 = vadd.f32 %v626, %v818
  %v820 = vpop.f32.mrb[0].mxu0
  %821 = vmatprep.mubr.f32.mxu0 0.0
  %822 = vmatmul.mubr.f32.gmra.mrb[0].mxu0 %v680
  %v823 = vpop.f32.mrb[0].mxu0
  %v824 = vadd.f32 %v631, %v823
  %v825 = vpop.f32.mrb[0].mxu0
  %826 = vdwg.mxu0
  %v827 = vld [vmem:[%s2 + $0x60] sm:$0xff]
  %v828 = vld [vmem:[%s2 + $0x68] sm:$0xff]
  %v829 = vld [vmem:[%s2 + $0x70] sm:$0xff]
  %v830 = vld [vmem:[%s2 + $0x78] sm:$0xff]
  %v831 = vld [vmem:[%s2 + $0x80] sm:$0xff]
  %v832 = vld [vmem:[%s2 + $0x88] sm:$0xff]
  %v833 = vld [vmem:[%s2 + $0x90] sm:$0xff]
  %v834 = vld [vmem:[%s2 + $0x98] sm:$0xff]
  %v835 = vld [vmem:[%s2 + $0xa0] sm:$0xff]
  %v836 = vld [vmem:[%s2 + $0xa8] sm:$0xff]
  %v837 = vld [vmem:[%s2 + $0xb0] sm:$0xff]
  %v838 = vld [vmem:[%s2 + $0xb8] sm:$0xff]
  %v839 = vld [vmem:[%s2 + $0xc0] sm:$0xff]
  %v840 = vld [vmem:[%s2 + $0xc8] sm:$0xff]
  %v841 = vld [vmem:[%s2 + $0xd0] sm:$0xff]
  %v842 = vld [vmem:[%s2 + $0xd8] sm:$0xff]
  %v843 = vadd.f32 %v749, %v827
  %v844 = vadd.f32 %v754, %v828
  %v845 = vadd.f32 %v759, %v829
  %v846 = vadd.f32 %v764, %v830
  %v847 = vadd.f32 %v769, %v831
  %v848 = vadd.f32 %v774, %v832
  %v849 = vadd.f32 %v779, %v833
  %v850 = vadd.f32 %v784, %v834
  %v851 = vadd.f32 %v789, %v835
  %v852 = vadd.f32 %v794, %v836
  %v853 = vadd.f32 %v799, %v837
  %v854 = vadd.f32 %v804, %v838
  %v855 = vadd.f32 %v809, %v839
  %v856 = vadd.f32 %v814, %v840
  %v857 = vadd.f32 %v819, %v841
  %v858 = vadd.f32 %v824, %v842
  %v859 = vld [vmem:[%s1 + $0x160] sm:$0xff]
  %v860 = vld [vmem:[%s1 + $0x168] sm:$0xff]
  %862 = vset.pattern.permute.xlu0 0
  %863 = vperm.xlu0 %862, %v843
  %v864 = vpop.permute.xlu0 %863
  %867 = vset.pattern.permute.xlu0 0
  %868 = vperm.xlu0 %867, %v844
  %v869 = vpop.permute.xlu0 %868
  %v871 = vmul.f32 %v864, %v859
  %v872 = vmul.f32 %v869, %v860
  %874 = vset.pattern.permute.xlu0 0
  %875 = vperm.xlu0 %874, %v845
  %v876 = vpop.permute.xlu0 %875
  %879 = vset.pattern.permute.xlu0 0
  %880 = vperm.xlu0 %879, %v846
  %v881 = vpop.permute.xlu0 %880
  %v883 = vadd.f32 %v871, %v876
  %v884 = vadd.f32 %v872, %v881
  %v885 = vld [vmem:[%s1 + $0x170] sm:$0xff]
  %vm886 = vcmask 64512
  %v888 = vsel %vm886, %v883, 0
  %v891 = vsel %vm886, %v884, 0
  %893 = vmatprep.subr.mxu0 0.0
  %894 = vmatpush1.msra.mxu0 %v885
  %895 = vmatprep.subr.mxu0 0.0
  %896 = vmatpush1.msra.mxu0 0.0
  %897 = vmatprep.subr.mxu0 0.0
  %898 = vmatpush1.msra.mxu0 0.0
  %899 = vmatprep.subr.mxu0 0.0
  %900 = vmatpush1.msra.mxu0 0.0
  %901 = vmatprep.subr.mxu0 0.0
  %902 = vmatpush1.msra.mxu0 0.0
  %903 = vmatprep.subr.mxu0 0.0
  %904 = vmatpush1.msra.mxu0 0.0
  %905 = vmatprep.subr.mxu0 0.0
  %906 = vmatpush1.msra.mxu0 0.0
  %907 = vmatprep.subr.mxu0 0.0
  %908 = vmatpush1.msra.mxu0 0.0
  %909 = vmatprep.subr.mxu0 0.0
  %910 = vmatpush1.msra.mxu0 0.0
  %911 = vmatprep.subr.mxu0 0.0
  %912 = vmatpush1.msra.mxu0 0.0
  %913 = vmatprep.subr.mxu0 0.0
  %914 = vmatpush1.msra.mxu0 0.0
  %915 = vmatprep.subr.mxu0 0.0
  %916 = vmatpush1.msra.mxu0 0.0
  %917 = vmatprep.subr.mxu0 0.0
  %918 = vmatpush1.msra.mxu0 0.0
  %919 = vmatprep.subr.mxu0 0.0
  %920 = vmatpush1.msra.mxu0 0.0
  %921 = vmatprep.subr.mxu0 0.0
  %922 = vmatpush1.msra.mxu0 0.0
  %923 = vmatprep.subr.mxu0 0.0
  %924 = vmatpush1.msra.mxu0 0.0
  %925 = vmatprep.subr.mxu0 0.0
  %926 = vmatpush1.msra.mxu0 0.0
  %927 = vmatprep.subr.mxu0 0.0
  %928 = vmatpush1.msra.mxu0 0.0
  %929 = vmatprep.subr.mxu0 0.0
  %930 = vmatpush1.msra.mxu0 0.0
  %931 = vmatprep.subr.mxu0 0.0
  %932 = vmatpush1.msra.mxu0 0.0
  %933 = vmatprep.subr.mxu0 0.0
  %934 = vmatpush1.msra.mxu0 0.0
  %935 = vmatprep.subr.mxu0 0.0
  %936 = vmatpush1.msra.mxu0 0.0
  %937 = vmatprep.subr.mxu0 0.0
  %938 = vmatpush1.msra.mxu0 0.0
  %939 = vmatprep.subr.mxu0 0.0
  %940 = vmatpush1.msra.mxu0 0.0
  %941 = vmatprep.subr.mxu0 0.0
  %942 = vmatpush1.msra.mxu0 0.0
  %943 = vmatprep.subr.mxu0 0.0
  %944 = vmatpush1.msra.mxu0 0.0
  %945 = vmatprep.subr.mxu0 0.0
  %946 = vmatpush1.msra.mxu0 0.0
  %947 = vmatprep.subr.mxu0 0.0
  %948 = vmatpush1.msra.mxu0 0.0
  %949 = vmatprep.subr.mxu0 0.0
  %950 = vmatpush1.msra.mxu0 0.0
  %951 = vmatprep.subr.mxu0 0.0
  %952 = vmatpush1.msra.mxu0 0.0
  %953 = vmatprep.subr.mxu0 0.0
  %954 = vmatpush1.msra.mxu0 0.0
  %955 = vmatprep.subr.mxu0 0.0
  %956 = vmatpush1.msra.mxu0 0.0
  %957 = vmatprep.mubr.f32.mxu0 0.0
  %958 = vmatmul.mubr.f32.gmra.mrb[0].mxu0 %v888
  %v959 = vpop.f32.mrb[0].mxu0
  %v960 = vadd.f32 0.0, %v959
  %v961 = vpop.f32.mrb[0].mxu0
  %962 = vmatprep.mubr.f32.mxu0 0.0
  %963 = vmatmul.mubr.f32.gmra.mrb[0].mxu0 %v891
  %v964 = vpop.f32.mrb[0].mxu0
  %v965 = vadd.f32 0.0, %v964
  %v966 = vpop.f32.mrb[0].mxu0
  %967 = vdwg.mxu0
  %v968 = vld [vmem:[%s1 + $0x178] sm:$0xff]
  %969 = vmatprep.subr.mxu0 0.0
  %970 = vmatpush1.msra.mxu0 %v968
  %971 = vmatprep.subr.mxu0 0.0
  %972 = vmatpush1.msra.mxu0 0.0
  %973 = vmatprep.subr.mxu0 0.0
  %974 = vmatpush1.msra.mxu0 0.0
  %975 = vmatprep.subr.mxu0 0.0
  %976 = vmatpush1.msra.mxu0 0.0
  %977 = vmatprep.subr.mxu0 0.0
  %978 = vmatpush1.msra.mxu0 0.0
  %979 = vmatprep.subr.mxu0 0.0
  %980 = vmatpush1.msra.mxu0 0.0
  %981 = vmatprep.subr.mxu0 0.0
  %982 = vmatpush1.msra.mxu0 0.0
  %983 = vmatprep.subr.mxu0 0.0
  %984 = vmatpush1.msra.mxu0 0.0
  %985 = vmatprep.subr.mxu0 0.0
  %986 = vmatpush1.msra.mxu0 0.0
  %987 = vmatprep.subr.mxu0 0.0
  %988 = vmatpush1.msra.mxu0 0.0
  %989 = vmatprep.subr.mxu0 0.0
  %990 = vmatpush1.msra.mxu0 0.0
  %991 = vmatprep.subr.mxu0 0.0
  %992 = vmatpush1.msra.mxu0 0.0
  %993 = vmatprep.subr.mxu0 0.0
  %994 = vmatpush1.msra.mxu0 0.0
  %995 = vmatprep.subr.mxu0 0.0
  %996 = vmatpush1.msra.mxu0 0.0
  %997 = vmatprep.subr.mxu0 0.0
  %998 = vmatpush1.msra.mxu0 0.0
  %999 = vmatprep.subr.mxu0 0.0
  %1000 = vmatpush1.msra.mxu0 0.0
  %1001 = vmatprep.subr.mxu0 0.0
  %1002 = vmatpush1.msra.mxu0 0.0
  %1003 = vmatprep.subr.mxu0 0.0
  %1004 = vmatpush1.msra.mxu0 0.0
  %1005 = vmatprep.subr.mxu0 0.0
  %1006 = vmatpush1.msra.mxu0 0.0
  %1007 = vmatprep.subr.mxu0 0.0
  %1008 = vmatpush1.msra.mxu0 0.0
  %1009 = vmatprep.subr.mxu0 0.0
  %1010 = vmatpush1.msra.mxu0 0.0
  %1011 = vmatprep.subr.mxu0 0.0
  %1012 = vmatpush1.msra.mxu0 0.0
  %1013 = vmatprep.subr.mxu0 0.0
  %1014 = vmatpush1.msra.mxu0 0.0
  %1015 = vmatprep.subr.mxu0 0.0
  %1016 = vmatpush1.msra.mxu0 0.0
  %1017 = vmatprep.subr.mxu0 0.0
  %1018 = vmatpush1.msra.mxu0 0.0
  %1019 = vmatprep.subr.mxu0 0.0
  %1020 = vmatpush1.msra.mxu0 0.0
  %1021 = vmatprep.subr.mxu0 0.0
  %1022 = vmatpush1.msra.mxu0 0.0
  %1023 = vmatprep.subr.mxu0 0.0
  %1024 = vmatpush1.msra.mxu0 0.0
  %1025 = vmatprep.subr.mxu0 0.0
  %1026 = vmatpush1.msra.mxu0 0.0
  %1027 = vmatprep.subr.mxu0 0.0
  %1028 = vmatpush1.msra.mxu0 0.0
  %1029 = vmatprep.subr.mxu0 0.0
  %1030 = vmatpush1.msra.mxu0 0.0
  %1031 = vmatprep.subr.mxu0 0.0
  %1032 = vmatpush1.msra.mxu0 0.0
  %1033 = vmatprep.mubr.f32.mxu0 0.0
  %1034 = vmatmul.mubr.f32.gmra.mrb[0].mxu0 %v888
  %v1035 = vpop.f32.mrb[0].mxu0
  %v1036 = vadd.f32 0.0, %v1035
  %v1037 = vpop.f32.mrb[0].mxu0
  %1038 = vmatprep.mubr.f32.mxu0 0.0
  %1039 = vmatmul.mubr.f32.gmra.mrb[0].mxu0 %v891
  %v1040 = vpop.f32.mrb[0].mxu0
  %v1041 = vadd.f32 0.0, %v1040
  %v1042 = vpop.f32.mrb[0].mxu0
  %1043 = vdwg.mxu0
  %v1044 = vld [vmem:[%s1 + $0x180] sm:$0xff]
  %v1045 = vld [vmem:[%s1 + $0x188] sm:$0xff]
  %v1046 = vld [vmem:[%s2 + $0xe0] sm:$0xff]
  %v1047 = vld [vmem:[%s2 + $0xe8] sm:$0xff]
  %1049 = vset.pattern.permute.xlu0 0
  %1050 = vperm.xlu0 %1049, %v1046
  %v1051 = vpop.permute.xlu0 %1050
  %1054 = vset.pattern.permute.xlu0 0
  %1055 = vperm.xlu0 %1054, %v1047
  %v1056 = vpop.permute.xlu0 %1055
  %vm1058 = vcmask 392192
  %v1060 = vsel %vm1058, %v1044, 0
  %v1063 = vsel %vm1058, %v1045, 0
  %1065 = vmatprep.subr.mxu0 0.0
  %1066 = vmatpush1.msra.mxu0 %v960
  %1067 = vmatprep.subr.mxu0 0.0
  %1068 = vmatpush1.msra.mxu0 %v965
  %1069 = vmatprep.subr.mxu0 0.0
  %1070 = vmatpush1.msra.mxu0 %v883
  %1071 = vmatprep.subr.mxu0 0.0
  %1072 = vmatpush1.msra.mxu0 %v884
  %1073 = vmatprep.subr.mxu0 0.0
  %1074 = vmatpush1.msra.mxu0 %v1036
  %1075 = vmatprep.subr.mxu0 0.0
  %1076 = vmatpush1.msra.mxu0 %v1041
  %1077 = vmatprep.subr.mxu0 0.0
  %1078 = vmatpush1.msra.mxu0 0.0
  %1079 = vmatprep.subr.mxu0 0.0
  %1080 = vmatpush1.msra.mxu0 0.0
  %1081 = vmatprep.subr.mxu0 0.0
  %1082 = vmatpush1.msra.mxu0 0.0
  %1083 = vmatprep.subr.mxu0 0.0
  %1084 = vmatpush1.msra.mxu0 0.0
  %1085 = vmatprep.subr.mxu0 0.0
  %1086 = vmatpush1.msra.mxu0 0.0
  %1087 = vmatprep.subr.mxu0 0.0
  %1088 = vmatpush1.msra.mxu0 0.0
  %1089 = vmatprep.subr.mxu0 0.0
  %1090 = vmatpush1.msra.mxu0 0.0
  %1091 = vmatprep.subr.mxu0 0.0
  %1092 = vmatpush1.msra.mxu0 0.0
  %1093 = vmatprep.subr.mxu0 0.0
  %1094 = vmatpush1.msra.mxu0 0.0
  %1095 = vmatprep.subr.mxu0 0.0
  %1096 = vmatpush1.msra.mxu0 0.0
  %1097 = vmatprep.subr.mxu0 0.0
  %1098 = vmatpush1.msra.mxu0 0.0
  %1099 = vmatprep.subr.mxu0 0.0
  %1100 = vmatpush1.msra.mxu0 0.0
  %1101 = vmatprep.subr.mxu0 0.0
  %1102 = vmatpush1.msra.mxu0 0.0
  %1103 = vmatprep.subr.mxu0 0.0
  %1104 = vmatpush1.msra.mxu0 0.0
  %1105 = vmatprep.subr.mxu0 0.0
  %1106 = vmatpush1.msra.mxu0 0.0
  %1107 = vmatprep.subr.mxu0 0.0
  %1108 = vmatpush1.msra.mxu0 0.0
  %1109 = vmatprep.subr.mxu0 0.0
  %1110 = vmatpush1.msra.mxu0 0.0
  %1111 = vmatprep.subr.mxu0 0.0
  %1112 = vmatpush1.msra.mxu0 0.0
  %1113 = vmatprep.subr.mxu0 0.0
  %1114 = vmatpush1.msra.mxu0 0.0
  %1115 = vmatprep.subr.mxu0 0.0
  %1116 = vmatpush1.msra.mxu0 0.0
  %1117 = vmatprep.subr.mxu0 0.0
  %1118 = vmatpush1.msra.mxu0 0.0
  %1119 = vmatprep.subr.mxu0 0.0
  %1120 = vmatpush1.msra.mxu0 0.0
  %1121 = vmatprep.subr.mxu0 0.0
  %1122 = vmatpush1.msra.mxu0 0.0
  %1123 = vmatprep.subr.mxu0 0.0
  %1124 = vmatpush1.msra.mxu0 0.0
  %1125 = vmatprep.subr.mxu0 0.0
  %1126 = vmatpush1.msra.mxu0 0.0
  %1127 = vmatprep.subr.mxu0 0.0
  %1128 = vmatpush1.msra.mxu0 0.0
  %1129 = vmatprep.mubr.f32.mxu0 0.0
  %1130 = vmatmul.mubr.f32.gmra.mrb[0].mxu0 %v1060
  %v1131 = vpop.f32.mrb[0].mxu0
  %v1132 = vadd.f32 %v1051, %v1131
  %v1133 = vpop.f32.mrb[0].mxu0
  %1134 = vmatprep.mubr.f32.mxu0 0.0
  %1135 = vmatmul.mubr.f32.gmra.mrb[0].mxu0 %v1063
  %v1136 = vpop.f32.mrb[0].mxu0
  %v1137 = vadd.f32 %v1056, %v1136
  %v1138 = vpop.f32.mrb[0].mxu0
  %1139 = vdwg.mxu0
  %v1140 = vmax.f32 %v1132, 0.0
  %v1141 = vmax.f32 %v1137, 0.0
  %v1142 = vsel %vm886, %v1140, 0.0
  %1143 = vadd.xlane.f32.xlu0 %v1142
  %v1144 = vpop.xlane.xlu0 %1143
  %v1145 = vsel %vm886, %v1141, 0.0
  %1146 = vadd.xlane.f32.xlu0 %v1145
  %v1147 = vpop.xlane.xlu0 %1146
  %v1148 = vmul.f32 %v1140, %v1140
  %v1149 = vmul.f32 %v1141, %v1141
  %v1150 = vsel %vm886, %v1148, 0.0
  %1151 = vadd.xlane.f32.xlu0 %v1150
  %v1152 = vpop.xlane.xlu0 %1151
  %v1153 = vsel %vm886, %v1149, 0.0
  %1154 = vadd.xlane.f32.xlu0 %v1153
  %v1155 = vpop.xlane.xlu0 %1154
  %v1156 = vmul.f32 %v1144, 0.125
  %v1157 = vmul.f32 %v1147, 0.125
  %v1158 = vmul.f32 %v1144, %v1156
  %v1159 = vmul.f32 %v1147, %v1157
  %v1160 = vsub.f32 %v1152, %v1158
  %v1161 = vsub.f32 %v1155, %v1159
  %v1162 = vmul.f32 %v1160, 0.14285715
  %v1163 = vmul.f32 %v1161, 0.14285715
  %v1164 = vsub.f32 %v1140, %v1156
  %v1165 = vsub.f32 %v1141, %v1157
  %v1166 = vadd.f32 %v1162, 1e-08
  %v1167 = vadd.f32 %v1163, 1e-08
  %v1168 = vrsqrt.pop %v1166
  %v1169 = vrsqrt.pop %v1167
  %v1170 = vmul.f32 %v1164, %v1168
  %v1171 = vmul.f32 %v1165, %v1169
  %1173 = vset.pattern.permute.xlu0 0
  %1174 = vperm.xlu0 %1173, %v847
  %v1175 = vpop.permute.xlu0 %1174
  %1178 = vset.pattern.permute.xlu0 0
  %1179 = vperm.xlu0 %1178, %v848
  %v1180 = vpop.permute.xlu0 %1179
  %v1182 = vmul.f32 %v1175, %v1170
  %v1183 = vmul.f32 %v1180, %v1171
  %1185 = vset.pattern.permute.xlu0 0
  %1186 = vperm.xlu0 %1185, %v849
  %v1187 = vpop.permute.xlu0 %1186
  %1190 = vset.pattern.permute.xlu0 0
  %1191 = vperm.xlu0 %1190, %v850
  %v1192 = vpop.permute.xlu0 %1191
  %v1194 = vadd.f32 %v1182, %v1187
  %v1195 = vadd.f32 %v1183, %v1192
  %v1196 = vld [vmem:[%s1 + $0x190] sm:$0xff]
  %v1198 = vsel %vm886, %v1194, 0
  %v1201 = vsel %vm886, %v1195, 0
  %1203 = vmatprep.subr.mxu0 0.0
  %1204 = vmatpush1.msra.mxu0 %v1196
  %1205 = vmatprep.subr.mxu0 0.0
  %1206 = vmatpush1.msra.mxu0 0.0
  %1207 = vmatprep.subr.mxu0 0.0
  %1208 = vmatpush1.msra.mxu0 0.0
  %1209 = vmatprep.subr.mxu0 0.0
  %1210 = vmatpush1.msra.mxu0 0.0
  %1211 = vmatprep.subr.mxu0 0.0
  %1212 = vmatpush1.msra.mxu0 0.0
  %1213 = vmatprep.subr.mxu0 0.0
  %1214 = vmatpush1.msra.mxu0 0.0
  %1215 = vmatprep.subr.mxu0 0.0
  %1216 = vmatpush1.msra.mxu0 0.0
  %1217 = vmatprep.subr.mxu0 0.0
  %1218 = vmatpush1.msra.mxu0 0.0
  %1219 = vmatprep.subr.mxu0 0.0
  %1220 = vmatpush1.msra.mxu0 0.0
  %1221 = vmatprep.subr.mxu0 0.0
  %1222 = vmatpush1.msra.mxu0 0.0
  %1223 = vmatprep.subr.mxu0 0.0
  %1224 = vmatpush1.msra.mxu0 0.0
  %1225 = vmatprep.subr.mxu0 0.0
  %1226 = vmatpush1.msra.mxu0 0.0
  %1227 = vmatprep.subr.mxu0 0.0
  %1228 = vmatpush1.msra.mxu0 0.0
  %1229 = vmatprep.subr.mxu0 0.0
  %1230 = vmatpush1.msra.mxu0 0.0
  %1231 = vmatprep.subr.mxu0 0.0
  %1232 = vmatpush1.msra.mxu0 0.0
  %1233 = vmatprep.subr.mxu0 0.0
  %1234 = vmatpush1.msra.mxu0 0.0
  %1235 = vmatprep.subr.mxu0 0.0
  %1236 = vmatpush1.msra.mxu0 0.0
  %1237 = vmatprep.subr.mxu0 0.0
  %1238 = vmatpush1.msra.mxu0 0.0
  %1239 = vmatprep.subr.mxu0 0.0
  %1240 = vmatpush1.msra.mxu0 0.0
  %1241 = vmatprep.subr.mxu0 0.0
  %1242 = vmatpush1.msra.mxu0 0.0
  %1243 = vmatprep.subr.mxu0 0.0
  %1244 = vmatpush1.msra.mxu0 0.0
  %1245 = vmatprep.subr.mxu0 0.0
  %1246 = vmatpush1.msra.mxu0 0.0
  %1247 = vmatprep.subr.mxu0 0.0
  %1248 = vmatpush1.msra.mxu0 0.0
  %1249 = vmatprep.subr.mxu0 0.0
  %1250 = vmatpush1.msra.mxu0 0.0
  %1251 = vmatprep.subr.mxu0 0.0
  %1252 = vmatpush1.msra.mxu0 0.0
  %1253 = vmatprep.subr.mxu0 0.0
  %1254 = vmatpush1.msra.mxu0 0.0
  %1255 = vmatprep.subr.mxu0 0.0
  %1256 = vmatpush1.msra.mxu0 0.0
  %1257 = vmatprep.subr.mxu0 0.0
  %1258 = vmatpush1.msra.mxu0 0.0
  %1259 = vmatprep.subr.mxu0 0.0
  %1260 = vmatpush1.msra.mxu0 0.0
  %1261 = vmatprep.subr.mxu0 0.0
  %1262 = vmatpush1.msra.mxu0 0.0
  %1263 = vmatprep.subr.mxu0 0.0
  %1264 = vmatpush1.msra.mxu0 0.0
  %1265 = vmatprep.subr.mxu0 0.0
  %1266 = vmatpush1.msra.mxu0 0.0
  %1267 = vmatprep.mubr.f32.mxu0 0.0
  %1268 = vmatmul.mubr.f32.gmra.mrb[0].mxu0 %v1198
  %v1269 = vpop.f32.mrb[0].mxu0
  %v1270 = vadd.f32 0.0, %v1269
  %v1271 = vpop.f32.mrb[0].mxu0
  %1272 = vmatprep.mubr.f32.mxu0 0.0
  %1273 = vmatmul.mubr.f32.gmra.mrb[0].mxu0 %v1201
  %v1274 = vpop.f32.mrb[0].mxu0
  %v1275 = vadd.f32 0.0, %v1274
  %v1276 = vpop.f32.mrb[0].mxu0
  %1277 = vdwg.mxu0
  %v1278 = vld [vmem:[%s1 + $0x198] sm:$0xff]
  %1279 = vmatprep.subr.mxu0 0.0
  %1280 = vmatpush1.msra.mxu0 %v1278
  %1281 = vmatprep.subr.mxu0 0.0
  %1282 = vmatpush1.msra.mxu0 0.0
  %1283 = vmatprep.subr.mxu0 0.0
  %1284 = vmatpush1.msra.mxu0 0.0
  %1285 = vmatprep.subr.mxu0 0.0
  %1286 = vmatpush1.msra.mxu0 0.0
  %1287 = vmatprep.subr.mxu0 0.0
  %1288 = vmatpush1.msra.mxu0 0.0
  %1289 = vmatprep.subr.mxu0 0.0
  %1290 = vmatpush1.msra.mxu0 0.0
  %1291 = vmatprep.subr.mxu0 0.0
  %1292 = vmatpush1.msra.mxu0 0.0
  %1293 = vmatprep.subr.mxu0 0.0
  %1294 = vmatpush1.msra.mxu0 0.0
  %1295 = vmatprep.subr.mxu0 0.0
  %1296 = vmatpush1.msra.mxu0 0.0
  %1297 = vmatprep.subr.mxu0 0.0
  %1298 = vmatpush1.msra.mxu0 0.0
  %1299 = vmatprep.subr.mxu0 0.0
  %1300 = vmatpush1.msra.mxu0 0.0
  %1301 = vmatprep.subr.mxu0 0.0
  %1302 = vmatpush1.msra.mxu0 0.0
  %1303 = vmatprep.subr.mxu0 0.0
  %1304 = vmatpush1.msra.mxu0 0.0
  %1305 = vmatprep.subr.mxu0 0.0
  %1306 = vmatpush1.msra.mxu0 0.0
  %1307 = vmatprep.subr.mxu0 0.0
  %1308 = vmatpush1.msra.mxu0 0.0
  %1309 = vmatprep.subr.mxu0 0.0
  %1310 = vmatpush1.msra.mxu0 0.0
  %1311 = vmatprep.subr.mxu0 0.0
  %1312 = vmatpush1.msra.mxu0 0.0
  %1313 = vmatprep.subr.mxu0 0.0
  %1314 = vmatpush1.msra.mxu0 0.0
  %1315 = vmatprep.subr.mxu0 0.0
  %1316 = vmatpush1.msra.mxu0 0.0
  %1317 = vmatprep.subr.mxu0 0.0
  %1318 = vmatpush1.msra.mxu0 0.0
  %1319 = vmatprep.subr.mxu0 0.0
  %1320 = vmatpush1.msra.mxu0 0.0
  %1321 = vmatprep.subr.mxu0 0.0
  %1322 = vmatpush1.msra.mxu0 0.0
  %1323 = vmatprep.subr.mxu0 0.0
  %1324 = vmatpush1.msra.mxu0 0.0
  %1325 = vmatprep.subr.mxu0 0.0
  %1326 = vmatpush1.msra.mxu0 0.0
  %1327 = vmatprep.subr.mxu0 0.0
  %1328 = vmatpush1.msra.mxu0 0.0
  %1329 = vmatprep.subr.mxu0 0.0
  %1330 = vmatpush1.msra.mxu0 0.0
  %1331 = vmatprep.subr.mxu0 0.0
  %1332 = vmatpush1.msra.mxu0 0.0
  %1333 = vmatprep.subr.mxu0 0.0
  %1334 = vmatpush1.msra.mxu0 0.0
  %1335 = vmatprep.subr.mxu0 0.0
  %1336 = vmatpush1.msra.mxu0 0.0
  %1337 = vmatprep.subr.mxu0 0.0
  %1338 = vmatpush1.msra.mxu0 0.0
  %1339 = vmatprep.subr.mxu0 0.0
  %1340 = vmatpush1.msra.mxu0 0.0
  %1341 = vmatprep.subr.mxu0 0.0
  %1342 = vmatpush1.msra.mxu0 0.0
  %1343 = vmatprep.mubr.f32.mxu0 0.0
  %1344 = vmatmul.mubr.f32.gmra.mrb[0].mxu0 %v1198
  %v1345 = vpop.f32.mrb[0].mxu0
  %v1346 = vadd.f32 0.0, %v1345
  %v1347 = vpop.f32.mrb[0].mxu0
  %1348 = vmatprep.mubr.f32.mxu0 0.0
  %1349 = vmatmul.mubr.f32.gmra.mrb[0].mxu0 %v1201
  %v1350 = vpop.f32.mrb[0].mxu0
  %v1351 = vadd.f32 0.0, %v1350
  %v1352 = vpop.f32.mrb[0].mxu0
  %1353 = vdwg.mxu0
  %v1354 = vld [vmem:[%s1 + $0x1a0] sm:$0xff]
  %1355 = vmatprep.subr.mxu0 0.0
  %1356 = vmatpush1.msra.mxu0 %v1354
  %1357 = vmatprep.subr.mxu0 0.0
  %1358 = vmatpush1.msra.mxu0 0.0
  %1359 = vmatprep.subr.mxu0 0.0
  %1360 = vmatpush1.msra.mxu0 0.0
  %1361 = vmatprep.subr.mxu0 0.0
  %1362 = vmatpush1.msra.mxu0 0.0
  %1363 = vmatprep.subr.mxu0 0.0
  %1364 = vmatpush1.msra.mxu0 0.0
  %1365 = vmatprep.subr.mxu0 0.0
  %1366 = vmatpush1.msra.mxu0 0.0
  %1367 = vmatprep.subr.mxu0 0.0
  %1368 = vmatpush1.msra.mxu0 0.0
  %1369 = vmatprep.subr.mxu0 0.0
  %1370 = vmatpush1.msra.mxu0 0.0
  %1371 = vmatprep.subr.mxu0 0.0
  %1372 = vmatpush1.msra.mxu0 0.0
  %1373 = vmatprep.subr.mxu0 0.0
  %1374 = vmatpush1.msra.mxu0 0.0
  %1375 = vmatprep.subr.mxu0 0.0
  %1376 = vmatpush1.msra.mxu0 0.0
  %1377 = vmatprep.subr.mxu0 0.0
  %1378 = vmatpush1.msra.mxu0 0.0
  %1379 = vmatprep.subr.mxu0 0.0
  %1380 = vmatpush1.msra.mxu0 0.0
  %1381 = vmatprep.subr.mxu0 0.0
  %1382 = vmatpush1.msra.mxu0 0.0
  %1383 = vmatprep.subr.mxu0 0.0
  %1384 = vmatpush1.msra.mxu0 0.0
  %1385 = vmatprep.subr.mxu0 0.0
  %1386 = vmatpush1.msra.mxu0 0.0
  %1387 = vmatprep.subr.mxu0 0.0
  %1388 = vmatpush1.msra.mxu0 0.0
  %1389 = vmatprep.subr.mxu0 0.0
  %1390 = vmatpush1.msra.mxu0 0.0
  %1391 = vmatprep.subr.mxu0 0.0
  %1392 = vmatpush1.msra.mxu0 0.0
  %1393 = vmatprep.subr.mxu0 0.0
  %1394 = vmatpush1.msra.mxu0 0.0
  %1395 = vmatprep.subr.mxu0 0.0
  %1396 = vmatpush1.msra.mxu0 0.0
  %1397 = vmatprep.subr.mxu0 0.0
  %1398 = vmatpush1.msra.mxu0 0.0
  %1399 = vmatprep.subr.mxu0 0.0
  %1400 = vmatpush1.msra.mxu0 0.0
  %1401 = vmatprep.subr.mxu0 0.0
  %1402 = vmatpush1.msra.mxu0 0.0
  %1403 = vmatprep.subr.mxu0 0.0
  %1404 = vmatpush1.msra.mxu0 0.0
  %1405 = vmatprep.subr.mxu0 0.0
  %1406 = vmatpush1.msra.mxu0 0.0
  %1407 = vmatprep.subr.mxu0 0.0
  %1408 = vmatpush1.msra.mxu0 0.0
  %1409 = vmatprep.subr.mxu0 0.0
  %1410 = vmatpush1.msra.mxu0 0.0
  %1411 = vmatprep.subr.mxu0 0.0
  %1412 = vmatpush1.msra.mxu0 0.0
  %1413 = vmatprep.subr.mxu0 0.0
  %1414 = vmatpush1.msra.mxu0 0.0
  %1415 = vmatprep.subr.mxu0 0.0
  %1416 = vmatpush1.msra.mxu0 0.0
  %1417 = vmatprep.subr.mxu0 0.0
  %1418 = vmatpush1.msra.mxu0 0.0
  %1419 = vmatprep.mubr.f32.mxu0 0.0
  %1420 = vmatmul.mubr.f32.gmra.mrb[0].mxu0 %v1198
  %v1421 = vpop.f32.mrb[0].mxu0
  %v1422 = vadd.f32 0.0, %v1421
  %v1423 = vpop.f32.mrb[0].mxu0
  %1424 = vmatprep.mubr.f32.mxu0 0.0
  %1425 = vmatmul.mubr.f32.gmra.mrb[0].mxu0 %v1201
  %v1426 = vpop.f32.mrb[0].mxu0
  %v1427 = vadd.f32 0.0, %v1426
  %v1428 = vpop.f32.mrb[0].mxu0
  %1429 = vdwg.mxu0
  %v1430 = vld [vmem:[%s1 + $0x1a8] sm:$0xff]
  %v1431 = vld [vmem:[%s1 + $0x1b0] sm:$0xff]
  %v1432 = vld [vmem:[%s2 + $0xf0] sm:$0xff]
  %v1433 = vld [vmem:[%s2 + $0xf8] sm:$0xff]
  %1435 = vset.pattern.permute.xlu0 0
  %1436 = vperm.xlu0 %1435, %v1432
  %v1437 = vpop.permute.xlu0 %1436
  %1440 = vset.pattern.permute.xlu0 0
  %1441 = vperm.xlu0 %1440, %v1433
  %v1442 = vpop.permute.xlu0 %1441
  %v1445 = vsel %vm1058, %v1430, 0
  %v1448 = vsel %vm1058, %v1431, 0
  %1450 = vmatprep.subr.mxu0 0.0
  %1451 = vmatpush1.msra.mxu0 %v1270
  %1452 = vmatprep.subr.mxu0 0.0
  %1453 = vmatpush1.msra.mxu0 %v1275
  %1454 = vmatprep.subr.mxu0 0.0
  %1455 = vmatpush1.msra.mxu0 %v1346
  %1456 = vmatprep.subr.mxu0 0.0
  %1457 = vmatpush1.msra.mxu0 %v1351
  %1458 = vmatprep.subr.mxu0 0.0
  %1459 = vmatpush1.msra.mxu0 %v1422
  %1460 = vmatprep.subr.mxu0 0.0
  %1461 = vmatpush1.msra.mxu0 %v1427
  %1462 = vmatprep.subr.mxu0 0.0
  %1463 = vmatpush1.msra.mxu0 0.0
  %1464 = vmatprep.subr.mxu0 0.0
  %1465 = vmatpush1.msra.mxu0 0.0
  %1466 = vmatprep.subr.mxu0 0.0
  %1467 = vmatpush1.msra.mxu0 0.0
  %1468 = vmatprep.subr.mxu0 0.0
  %1469 = vmatpush1.msra.mxu0 0.0
  %1470 = vmatprep.subr.mxu0 0.0
  %1471 = vmatpush1.msra.mxu0 0.0
  %1472 = vmatprep.subr.mxu0 0.0
  %1473 = vmatpush1.msra.mxu0 0.0
  %1474 = vmatprep.subr.mxu0 0.0
  %1475 = vmatpush1.msra.mxu0 0.0
  %1476 = vmatprep.subr.mxu0 0.0
  %1477 = vmatpush1.msra.mxu0 0.0
  %1478 = vmatprep.subr.mxu0 0.0
  %1479 = vmatpush1.msra.mxu0 0.0
  %1480 = vmatprep.subr.mxu0 0.0
  %1481 = vmatpush1.msra.mxu0 0.0
  %1482 = vmatprep.subr.mxu0 0.0
  %1483 = vmatpush1.msra.mxu0 0.0
  %1484 = vmatprep.subr.mxu0 0.0
  %1485 = vmatpush1.msra.mxu0 0.0
  %1486 = vmatprep.subr.mxu0 0.0
  %1487 = vmatpush1.msra.mxu0 0.0
  %1488 = vmatprep.subr.mxu0 0.0
  %1489 = vmatpush1.msra.mxu0 0.0
  %1490 = vmatprep.subr.mxu0 0.0
  %1491 = vmatpush1.msra.mxu0 0.0
  %1492 = vmatprep.subr.mxu0 0.0
  %1493 = vmatpush1.msra.mxu0 0.0
  %1494 = vmatprep.subr.mxu0 0.0
  %1495 = vmatpush1.msra.mxu0 0.0
  %1496 = vmatprep.subr.mxu0 0.0
  %1497 = vmatpush1.msra.mxu0 0.0
  %1498 = vmatprep.subr.mxu0 0.0
  %1499 = vmatpush1.msra.mxu0 0.0
  %1500 = vmatprep.subr.mxu0 0.0
  %1501 = vmatpush1.msra.mxu0 0.0
  %1502 = vmatprep.subr.mxu0 0.0
  %1503 = vmatpush1.msra.mxu0 0.0
  %1504 = vmatprep.subr.mxu0 0.0
  %1505 = vmatpush1.msra.mxu0 0.0
  %1506 = vmatprep.subr.mxu0 0.0
  %1507 = vmatpush1.msra.mxu0 0.0
  %1508 = vmatprep.subr.mxu0 0.0
  %1509 = vmatpush1.msra.mxu0 0.0
  %1510 = vmatprep.subr.mxu0 0.0
  %1511 = vmatpush1.msra.mxu0 0.0
  %1512 = vmatprep.subr.mxu0 0.0
  %1513 = vmatpush1.msra.mxu0 0.0
  %1514 = vmatprep.mubr.f32.mxu0 0.0
  %1515 = vmatmul.mubr.f32.gmra.mrb[0].mxu0 %v1445
  %v1516 = vpop.f32.mrb[0].mxu0
  %v1517 = vadd.f32 %v1437, %v1516
  %v1518 = vpop.f32.mrb[0].mxu0
  %1519 = vmatprep.mubr.f32.mxu0 0.0
  %1520 = vmatmul.mubr.f32.gmra.mrb[0].mxu0 %v1448
  %v1521 = vpop.f32.mrb[0].mxu0
  %v1522 = vadd.f32 %v1442, %v1521
  %v1523 = vpop.f32.mrb[0].mxu0
  %1524 = vdwg.mxu0
  %v1525 = vmax.f32 %v1517, 0.0
  %v1526 = vmax.f32 %v1522, 0.0
  %v1527 = vsel %vm28, %v1525, 0.0
  %1528 = vadd.xlane.f32.xlu0 %v1527
  %v1529 = vpop.xlane.xlu0 %1528
  %v1530 = vsel %vm28, %v1526, 0.0
  %1531 = vadd.xlane.f32.xlu0 %v1530
  %v1532 = vpop.xlane.xlu0 %1531
  %v1533 = vmul.f32 %v1525, %v1525
  %v1534 = vmul.f32 %v1526, %v1526
  %v1535 = vsel %vm28, %v1533, 0.0
  %1536 = vadd.xlane.f32.xlu0 %v1535
  %v1537 = vpop.xlane.xlu0 %1536
  %v1538 = vsel %vm28, %v1534, 0.0
  %1539 = vadd.xlane.f32.xlu0 %v1538
  %v1540 = vpop.xlane.xlu0 %1539
  %v1541 = vmul.f32 %v1529, 0.0625
  %v1542 = vmul.f32 %v1532, 0.0625
  %v1543 = vmul.f32 %v1529, %v1541
  %v1544 = vmul.f32 %v1532, %v1542
  %v1545 = vsub.f32 %v1537, %v1543
  %v1546 = vsub.f32 %v1540, %v1544
  %v1547 = vmul.f32 %v1545, 0.06666667
  %v1548 = vmul.f32 %v1546, 0.06666667
  %v1549 = vsub.f32 %v1525, %v1541
  %v1550 = vsub.f32 %v1526, %v1542
  %v1551 = vadd.f32 %v1547, 1e-08
  %v1552 = vadd.f32 %v1548, 1e-08
  %v1553 = vrsqrt.pop %v1551
  %v1554 = vrsqrt.pop %v1552
  %v1555 = vmul.f32 %v1549, %v1553
  %v1556 = vmul.f32 %v1550, %v1554
  %1558 = vset.pattern.permute.xlu0 0
  %1559 = vperm.xlu0 %1558, %v851
  %v1560 = vpop.permute.xlu0 %1559
  %1563 = vset.pattern.permute.xlu0 0
  %1564 = vperm.xlu0 %1563, %v852
  %v1565 = vpop.permute.xlu0 %1564
  %v1567 = vmul.f32 %v1560, %v1555
  %v1568 = vmul.f32 %v1565, %v1556
  %1570 = vset.pattern.permute.xlu0 0
  %1571 = vperm.xlu0 %1570, %v853
  %v1572 = vpop.permute.xlu0 %1571
  %1575 = vset.pattern.permute.xlu0 0
  %1576 = vperm.xlu0 %1575, %v854
  %v1577 = vpop.permute.xlu0 %1576
  %v1579 = vadd.f32 %v1567, %v1572
  %v1580 = vadd.f32 %v1568, %v1577
  %v1581 = vld [vmem:[%s1 + $0x1b8] sm:$0xff]
  %v1582 = vld [vmem:[%s1 + $0x1c0] sm:$0xff]
  %v1584 = vsel %vm28, %v1579, 0
  %v1587 = vsel %vm28, %v1580, 0
  %1589 = vmatprep.subr.mxu0 0.0
  %1590 = vmatpush1.msra.mxu0 %v1581
  %1591 = vmatprep.subr.mxu0 0.0
  %1592 = vmatpush1.msra.mxu0 %v1582
  %1593 = vmatprep.subr.mxu0 0.0
  %1594 = vmatpush1.msra.mxu0 0.0
  %1595 = vmatprep.subr.mxu0 0.0
  %1596 = vmatpush1.msra.mxu0 0.0
  %1597 = vmatprep.subr.mxu0 0.0
  %1598 = vmatpush1.msra.mxu0 0.0
  %1599 = vmatprep.subr.mxu0 0.0
  %1600 = vmatpush1.msra.mxu0 0.0
  %1601 = vmatprep.subr.mxu0 0.0
  %1602 = vmatpush1.msra.mxu0 0.0
  %1603 = vmatprep.subr.mxu0 0.0
  %1604 = vmatpush1.msra.mxu0 0.0
  %1605 = vmatprep.subr.mxu0 0.0
  %1606 = vmatpush1.msra.mxu0 0.0
  %1607 = vmatprep.subr.mxu0 0.0
  %1608 = vmatpush1.msra.mxu0 0.0
  %1609 = vmatprep.subr.mxu0 0.0
  %1610 = vmatpush1.msra.mxu0 0.0
  %1611 = vmatprep.subr.mxu0 0.0
  %1612 = vmatpush1.msra.mxu0 0.0
  %1613 = vmatprep.subr.mxu0 0.0
  %1614 = vmatpush1.msra.mxu0 0.0
  %1615 = vmatprep.subr.mxu0 0.0
  %1616 = vmatpush1.msra.mxu0 0.0
  %1617 = vmatprep.subr.mxu0 0.0
  %1618 = vmatpush1.msra.mxu0 0.0
  %1619 = vmatprep.subr.mxu0 0.0
  %1620 = vmatpush1.msra.mxu0 0.0
  %1621 = vmatprep.subr.mxu0 0.0
  %1622 = vmatpush1.msra.mxu0 0.0
  %1623 = vmatprep.subr.mxu0 0.0
  %1624 = vmatpush1.msra.mxu0 0.0
  %1625 = vmatprep.subr.mxu0 0.0
  %1626 = vmatpush1.msra.mxu0 0.0
  %1627 = vmatprep.subr.mxu0 0.0
  %1628 = vmatpush1.msra.mxu0 0.0
  %1629 = vmatprep.subr.mxu0 0.0
  %1630 = vmatpush1.msra.mxu0 0.0
  %1631 = vmatprep.subr.mxu0 0.0
  %1632 = vmatpush1.msra.mxu0 0.0
  %1633 = vmatprep.subr.mxu0 0.0
  %1634 = vmatpush1.msra.mxu0 0.0
  %1635 = vmatprep.subr.mxu0 0.0
  %1636 = vmatpush1.msra.mxu0 0.0
  %1637 = vmatprep.subr.mxu0 0.0
  %1638 = vmatpush1.msra.mxu0 0.0
  %1639 = vmatprep.subr.mxu0 0.0
  %1640 = vmatpush1.msra.mxu0 0.0
  %1641 = vmatprep.subr.mxu0 0.0
  %1642 = vmatpush1.msra.mxu0 0.0
  %1643 = vmatprep.subr.mxu0 0.0
  %1644 = vmatpush1.msra.mxu0 0.0
  %1645 = vmatprep.subr.mxu0 0.0
  %1646 = vmatpush1.msra.mxu0 0.0
  %1647 = vmatprep.subr.mxu0 0.0
  %1648 = vmatpush1.msra.mxu0 0.0
  %1649 = vmatprep.subr.mxu0 0.0
  %1650 = vmatpush1.msra.mxu0 0.0
  %1651 = vmatprep.subr.mxu0 0.0
  %1652 = vmatpush1.msra.mxu0 0.0
  %1653 = vmatprep.mubr.f32.mxu0 0.0
  %1654 = vmatmul.mubr.f32.gmra.mrb[0].mxu0 %v1584
  %v1655 = vpop.f32.mrb[0].mxu0
  %v1656 = vadd.f32 0.0, %v1655
  %v1657 = vpop.f32.mrb[0].mxu0
  %1658 = vmatprep.mubr.f32.mxu0 0.0
  %1659 = vmatmul.mubr.f32.gmra.mrb[0].mxu0 %v1587
  %v1660 = vpop.f32.mrb[0].mxu0
  %v1661 = vadd.f32 0.0, %v1660
  %v1662 = vpop.f32.mrb[0].mxu0
  %1663 = vdwg.mxu0
  %v1664 = vld [vmem:[%s1 + $0x1c8] sm:$0xff]
  %v1665 = vld [vmem:[%s1 + $0x1d0] sm:$0xff]
  %1666 = vmatprep.subr.mxu0 0.0
  %1667 = vmatpush1.msra.mxu0 %v1664
  %1668 = vmatprep.subr.mxu0 0.0
  %1669 = vmatpush1.msra.mxu0 %v1665
  %1670 = vmatprep.subr.mxu0 0.0
  %1671 = vmatpush1.msra.mxu0 0.0
  %1672 = vmatprep.subr.mxu0 0.0
  %1673 = vmatpush1.msra.mxu0 0.0
  %1674 = vmatprep.subr.mxu0 0.0
  %1675 = vmatpush1.msra.mxu0 0.0
  %1676 = vmatprep.subr.mxu0 0.0
  %1677 = vmatpush1.msra.mxu0 0.0
  %1678 = vmatprep.subr.mxu0 0.0
  %1679 = vmatpush1.msra.mxu0 0.0
  %1680 = vmatprep.subr.mxu0 0.0
  %1681 = vmatpush1.msra.mxu0 0.0
  %1682 = vmatprep.subr.mxu0 0.0
  %1683 = vmatpush1.msra.mxu0 0.0
  %1684 = vmatprep.subr.mxu0 0.0
  %1685 = vmatpush1.msra.mxu0 0.0
  %1686 = vmatprep.subr.mxu0 0.0
  %1687 = vmatpush1.msra.mxu0 0.0
  %1688 = vmatprep.subr.mxu0 0.0
  %1689 = vmatpush1.msra.mxu0 0.0
  %1690 = vmatprep.subr.mxu0 0.0
  %1691 = vmatpush1.msra.mxu0 0.0
  %1692 = vmatprep.subr.mxu0 0.0
  %1693 = vmatpush1.msra.mxu0 0.0
  %1694 = vmatprep.subr.mxu0 0.0
  %1695 = vmatpush1.msra.mxu0 0.0
  %1696 = vmatprep.subr.mxu0 0.0
  %1697 = vmatpush1.msra.mxu0 0.0
  %1698 = vmatprep.subr.mxu0 0.0
  %1699 = vmatpush1.msra.mxu0 0.0
  %1700 = vmatprep.subr.mxu0 0.0
  %1701 = vmatpush1.msra.mxu0 0.0
  %1702 = vmatprep.subr.mxu0 0.0
  %1703 = vmatpush1.msra.mxu0 0.0
  %1704 = vmatprep.subr.mxu0 0.0
  %1705 = vmatpush1.msra.mxu0 0.0
  %1706 = vmatprep.subr.mxu0 0.0
  %1707 = vmatpush1.msra.mxu0 0.0
  %1708 = vmatprep.subr.mxu0 0.0
  %1709 = vmatpush1.msra.mxu0 0.0
  %1710 = vmatprep.subr.mxu0 0.0
  %1711 = vmatpush1.msra.mxu0 0.0
  %1712 = vmatprep.subr.mxu0 0.0
  %1713 = vmatpush1.msra.mxu0 0.0
  %1714 = vmatprep.subr.mxu0 0.0
  %1715 = vmatpush1.msra.mxu0 0.0
  %1716 = vmatprep.subr.mxu0 0.0
  %1717 = vmatpush1.msra.mxu0 0.0
  %1718 = vmatprep.subr.mxu0 0.0
  %1719 = vmatpush1.msra.mxu0 0.0
  %1720 = vmatprep.subr.mxu0 0.0
  %1721 = vmatpush1.msra.mxu0 0.0
  %1722 = vmatprep.subr.mxu0 0.0
  %1723 = vmatpush1.msra.mxu0 0.0
  %1724 = vmatprep.subr.mxu0 0.0
  %1725 = vmatpush1.msra.mxu0 0.0
  %1726 = vmatprep.subr.mxu0 0.0
  %1727 = vmatpush1.msra.mxu0 0.0
  %1728 = vmatprep.subr.mxu0 0.0
  %1729 = vmatpush1.msra.mxu0 0.0
  %1730 = vmatprep.mubr.f32.mxu0 0.0
  %1731 = vmatmul.mubr.f32.gmra.mrb[0].mxu0 %v1584
  %v1732 = vpop.f32.mrb[0].mxu0
  %v1733 = vadd.f32 0.0, %v1732
  %v1734 = vpop.f32.mrb[0].mxu0
  %1735 = vmatprep.mubr.f32.mxu0 0.0
  %1736 = vmatmul.mubr.f32.gmra.mrb[0].mxu0 %v1587
  %v1737 = vpop.f32.mrb[0].mxu0
  %v1738 = vadd.f32 0.0, %v1737
  %v1739 = vpop.f32.mrb[0].mxu0
  %1740 = vdwg.mxu0
  %v1741 = vld [vmem:[%s1 + $0x1d8] sm:$0xff]
  %v1742 = vld [vmem:[%s1 + $0x1e0] sm:$0xff]
  %v1743 = vld [vmem:[%s2 + $0x100] sm:$0xff]
  %v1744 = vld [vmem:[%s2 + $0x108] sm:$0xff]
  %1746 = vset.pattern.permute.xlu0 0
  %1747 = vperm.xlu0 %1746, %v1743
  %v1748 = vpop.permute.xlu0 %1747
  %1751 = vset.pattern.permute.xlu0 0
  %1752 = vperm.xlu0 %1751, %v1744
  %v1753 = vpop.permute.xlu0 %1752
  %v1756 = vsel %vm1058, %v1741, 0
  %v1759 = vsel %vm1058, %v1742, 0
  %1761 = vmatprep.subr.mxu0 0.0
  %1762 = vmatpush1.msra.mxu0 %v1656
  %1763 = vmatprep.subr.mxu0 0.0
  %1764 = vmatpush1.msra.mxu0 %v1661
  %1765 = vmatprep.subr.mxu0 0.0
  %1766 = vmatpush1.msra.mxu0 %v1579
  %1767 = vmatprep.subr.mxu0 0.0
  %1768 = vmatpush1.msra.mxu0 %v1580
  %1769 = vmatprep.subr.mxu0 0.0
  %1770 = vmatpush1.msra.mxu0 %v1733
  %1771 = vmatprep.subr.mxu0 0.0
  %1772 = vmatpush1.msra.mxu0 %v1738
  %1773 = vmatprep.subr.mxu0 0.0
  %1774 = vmatpush1.msra.mxu0 0.0
  %1775 = vmatprep.subr.mxu0 0.0
  %1776 = vmatpush1.msra.mxu0 0.0
  %1777 = vmatprep.subr.mxu0 0.0
  %1778 = vmatpush1.msra.mxu0 0.0
  %1779 = vmatprep.subr.mxu0 0.0
  %1780 = vmatpush1.msra.mxu0 0.0
  %1781 = vmatprep.subr.mxu0 0.0
  %1782 = vmatpush1.msra.mxu0 0.0
  %1783 = vmatprep.subr.mxu0 0.0
  %1784 = vmatpush1.msra.mxu0 0.0
  %1785 = vmatprep.subr.mxu0 0.0
  %1786 = vmatpush1.msra.mxu0 0.0
  %1787 = vmatprep.subr.mxu0 0.0
  %1788 = vmatpush1.msra.mxu0 0.0
  %1789 = vmatprep.subr.mxu0 0.0
  %1790 = vmatpush1.msra.mxu0 0.0
  %1791 = vmatprep.subr.mxu0 0.0
  %1792 = vmatpush1.msra.mxu0 0.0
  %1793 = vmatprep.subr.mxu0 0.0
  %1794 = vmatpush1.msra.mxu0 0.0
  %1795 = vmatprep.subr.mxu0 0.0
  %1796 = vmatpush1.msra.mxu0 0.0
  %1797 = vmatprep.subr.mxu0 0.0
  %1798 = vmatpush1.msra.mxu0 0.0
  %1799 = vmatprep.subr.mxu0 0.0
  %1800 = vmatpush1.msra.mxu0 0.0
  %1801 = vmatprep.subr.mxu0 0.0
  %1802 = vmatpush1.msra.mxu0 0.0
  %1803 = vmatprep.subr.mxu0 0.0
  %1804 = vmatpush1.msra.mxu0 0.0
  %1805 = vmatprep.subr.mxu0 0.0
  %1806 = vmatpush1.msra.mxu0 0.0
  %1807 = vmatprep.subr.mxu0 0.0
  %1808 = vmatpush1.msra.mxu0 0.0
  %1809 = vmatprep.subr.mxu0 0.0
  %1810 = vmatpush1.msra.mxu0 0.0
  %1811 = vmatprep.subr.mxu0 0.0
  %1812 = vmatpush1.msra.mxu0 0.0
  %1813 = vmatprep.subr.mxu0 0.0
  %1814 = vmatpush1.msra.mxu0 0.0
  %1815 = vmatprep.subr.mxu0 0.0
  %1816 = vmatpush1.msra.mxu0 0.0
  %1817 = vmatprep.subr.mxu0 0.0
  %1818 = vmatpush1.msra.mxu0 0.0
  %1819 = vmatprep.subr.mxu0 0.0
  %1820 = vmatpush1.msra.mxu0 0.0
  %1821 = vmatprep.subr.mxu0 0.0
  %1822 = vmatpush1.msra.mxu0 0.0
  %1823 = vmatprep.subr.mxu0 0.0
  %1824 = vmatpush1.msra.mxu0 0.0
  %1825 = vmatprep.mubr.f32.mxu0 0.0
  %1826 = vmatmul.mubr.f32.gmra.mrb[0].mxu0 %v1756
  %v1827 = vpop.f32.mrb[0].mxu0
  %v1828 = vadd.f32 %v1748, %v1827
  %v1829 = vpop.f32.mrb[0].mxu0
  %1830 = vmatprep.mubr.f32.mxu0 0.0
  %1831 = vmatmul.mubr.f32.gmra.mrb[0].mxu0 %v1759
  %v1832 = vpop.f32.mrb[0].mxu0
  %v1833 = vadd.f32 %v1753, %v1832
  %v1834 = vpop.f32.mrb[0].mxu0
  %1835 = vdwg.mxu0
  %v1836 = vmax.f32 %v1828, 0.0
  %v1837 = vmax.f32 %v1833, 0.0
  %v1838 = vsel %vm28, %v1836, 0.0
  %1839 = vadd.xlane.f32.xlu0 %v1838
  %v1840 = vpop.xlane.xlu0 %1839
  %v1841 = vsel %vm28, %v1837, 0.0
  %1842 = vadd.xlane.f32.xlu0 %v1841
  %v1843 = vpop.xlane.xlu0 %1842
  %v1844 = vmul.f32 %v1836, %v1836
  %v1845 = vmul.f32 %v1837, %v1837
  %v1846 = vsel %vm28, %v1844, 0.0
  %1847 = vadd.xlane.f32.xlu0 %v1846
  %v1848 = vpop.xlane.xlu0 %1847
  %v1849 = vsel %vm28, %v1845, 0.0
  %1850 = vadd.xlane.f32.xlu0 %v1849
  %v1851 = vpop.xlane.xlu0 %1850
  %v1852 = vmul.f32 %v1840, 0.0625
  %v1853 = vmul.f32 %v1843, 0.0625
  %v1854 = vmul.f32 %v1840, %v1852
  %v1855 = vmul.f32 %v1843, %v1853
  %v1856 = vsub.f32 %v1848, %v1854
  %v1857 = vsub.f32 %v1851, %v1855
  %v1858 = vmul.f32 %v1856, 0.06666667
  %v1859 = vmul.f32 %v1857, 0.06666667
  %v1860 = vsub.f32 %v1836, %v1852
  %v1861 = vsub.f32 %v1837, %v1853
  %v1862 = vadd.f32 %v1858, 1e-08
  %v1863 = vadd.f32 %v1859, 1e-08
  %v1864 = vrsqrt.pop %v1862
  %v1865 = vrsqrt.pop %v1863
  %v1866 = vmul.f32 %v1860, %v1864
  %v1867 = vmul.f32 %v1861, %v1865
  %1869 = vset.pattern.permute.xlu0 0
  %1870 = vperm.xlu0 %1869, %v855
  %v1871 = vpop.permute.xlu0 %1870
  %1874 = vset.pattern.permute.xlu0 0
  %1875 = vperm.xlu0 %1874, %v856
  %v1876 = vpop.permute.xlu0 %1875
  %v1878 = vmul.f32 %v1871, %v1866
  %v1879 = vmul.f32 %v1876, %v1867
  %1881 = vset.pattern.permute.xlu0 0
  %1882 = vperm.xlu0 %1881, %v857
  %v1883 = vpop.permute.xlu0 %1882
  %1886 = vset.pattern.permute.xlu0 0
  %1887 = vperm.xlu0 %1886, %v858
  %v1888 = vpop.permute.xlu0 %1887
  %v1890 = vadd.f32 %v1878, %v1883
  %v1891 = vadd.f32 %v1879, %v1888
  %v1892 = vld [vmem:[%s1 + $0x1e8] sm:$0xff]
  %v1893 = vld [vmem:[%s1 + $0x1f0] sm:$0xf]
  %v1894 = vld [vmem:[%s2 + $0x110] sm:$0xff]
  %v1895 = vld [vmem:[%s2 + $0x118] sm:$0xf]
  %1897 = vset.pattern.permute.xlu0 0
  %1898 = vperm.xlu0 %1897, %v1894
  %v1899 = vpop.permute.xlu0 %1898
  %1902 = vset.pattern.permute.xlu0 0
  %1903 = vperm.xlu0 %1902, %v1895
  %v1904 = vpop.permute.xlu0 %1903
  %v1907 = vsel %vm28, %v1892, 0
  %v1910 = vsel %vm28, %v1893, 0
  %1912 = vmatprep.subr.mxu0 0.0
  %1913 = vmatpush1.msra.mxu0 %v1890
  %1914 = vmatprep.subr.mxu0 0.0
  %1915 = vmatpush1.msra.mxu0 %v1891
  %1916 = vmatprep.subr.mxu0 0.0
  %1917 = vmatpush1.msra.mxu0 0.0
  %1918 = vmatprep.subr.mxu0 0.0
  %1919 = vmatpush1.msra.mxu0 0.0
  %1920 = vmatprep.subr.mxu0 0.0
  %1921 = vmatpush1.msra.mxu0 0.0
  %1922 = vmatprep.subr.mxu0 0.0
  %1923 = vmatpush1.msra.mxu0 0.0
  %1924 = vmatprep.subr.mxu0 0.0
  %1925 = vmatpush1.msra.mxu0 0.0
  %1926 = vmatprep.subr.mxu0 0.0
  %1927 = vmatpush1.msra.mxu0 0.0
  %1928 = vmatprep.subr.mxu0 0.0
  %1929 = vmatpush1.msra.mxu0 0.0
  %1930 = vmatprep.subr.mxu0 0.0
  %1931 = vmatpush1.msra.mxu0 0.0
  %1932 = vmatprep.subr.mxu0 0.0
  %1933 = vmatpush1.msra.mxu0 0.0
  %1934 = vmatprep.subr.mxu0 0.0
  %1935 = vmatpush1.msra.mxu0 0.0
  %1936 = vmatprep.subr.mxu0 0.0
  %1937 = vmatpush1.msra.mxu0 0.0
  %1938 = vmatprep.subr.mxu0 0.0
  %1939 = vmatpush1.msra.mxu0 0.0
  %1940 = vmatprep.subr.mxu0 0.0
  %1941 = vmatpush1.msra.mxu0 0.0
  %1942 = vmatprep.subr.mxu0 0.0
  %1943 = vmatpush1.msra.mxu0 0.0
  %1944 = vmatprep.subr.mxu0 0.0
  %1945 = vmatpush1.msra.mxu0 0.0
  %1946 = vmatprep.subr.mxu0 0.0
  %1947 = vmatpush1.msra.mxu0 0.0
  %1948 = vmatprep.subr.mxu0 0.0
  %1949 = vmatpush1.msra.mxu0 0.0
  %1950 = vmatprep.subr.mxu0 0.0
  %1951 = vmatpush1.msra.mxu0 0.0
  %1952 = vmatprep.subr.mxu0 0.0
  %1953 = vmatpush1.msra.mxu0 0.0
  %1954 = vmatprep.subr.mxu0 0.0
  %1955 = vmatpush1.msra.mxu0 0.0
  %1956 = vmatprep.subr.mxu0 0.0
  %1957 = vmatpush1.msra.mxu0 0.0
  %1958 = vmatprep.subr.mxu0 0.0
  %1959 = vmatpush1.msra.mxu0 0.0
  %1960 = vmatprep.subr.mxu0 0.0
  %1961 = vmatpush1.msra.mxu0 0.0
  %1962 = vmatprep.subr.mxu0 0.0
  %1963 = vmatpush1.msra.mxu0 0.0
  %1964 = vmatprep.subr.mxu0 0.0
  %1965 = vmatpush1.msra.mxu0 0.0
  %1966 = vmatprep.subr.mxu0 0.0
  %1967 = vmatpush1.msra.mxu0 0.0
  %1968 = vmatprep.subr.mxu0 0.0
  %1969 = vmatpush1.msra.mxu0 0.0
  %1970 = vmatprep.subr.mxu0 0.0
  %1971 = vmatpush1.msra.mxu0 0.0
  %1972 = vmatprep.subr.mxu0 0.0
  %1973 = vmatpush1.msra.mxu0 0.0
  %1974 = vmatprep.subr.mxu0 0.0
  %1975 = vmatpush1.msra.mxu0 0.0
  %1976 = vmatprep.mubr.f32.mxu0 0.0
  %1977 = vmatmul.mubr.f32.gmra.mrb[0].mxu0 %v1907
  %v1978 = vpop.f32.mrb[0].mxu0
  %v1979 = vadd.f32 %v1899, %v1978
  %v1980 = vpop.f32.mrb[0].mxu0
  %1981 = vmatprep.mubr.f32.mxu0 0.0
  %1982 = vmatmul.mubr.f32.gmra.mrb[0].mxu0 %v1910
  %v1983 = vpop.f32.mrb[0].mxu0
  %v1984 = vadd.f32 %v1904, %v1983
  %v1985 = vpop.f32.mrb[0].mxu0
  %1986 = vdwg.mxu0
  %v1987 = vld [vmem:[%s1 + $0x1f8] sm:$0xff]
  %v1988 = vld [vmem:[%s1 + $0x200] sm:$0xff]
  %v1990 = vsel %vm28, %v1979, 0
  %v1993 = vsel %vm28, %v1984, 0
  %1995 = vmatprep.subr.mxu0 0.0
  %1996 = vmatpush1.msra.mxu0 %v1987
  %1997 = vmatprep.subr.mxu0 0.0
  %1998 = vmatpush1.msra.mxu0 %v1988
  %1999 = vmatprep.subr.mxu0 0.0
  %2000 = vmatpush1.msra.mxu0 0.0
  %2001 = vmatprep.subr.mxu0 0.0
  %2002 = vmatpush1.msra.mxu0 0.0
  %2003 = vmatprep.subr.mxu0 0.0
  %2004 = vmatpush1.msra.mxu0 0.0
  %2005 = vmatprep.subr.mxu0 0.0
  %2006 = vmatpush1.msra.mxu0 0.0
  %2007 = vmatprep.subr.mxu0 0.0
  %2008 = vmatpush1.msra.mxu0 0.0
  %2009 = vmatprep.subr.mxu0 0.0
  %2010 = vmatpush1.msra.mxu0 0.0
  %2011 = vmatprep.subr.mxu0 0.0
  %2012 = vmatpush1.msra.mxu0 0.0
  %2013 = vmatprep.subr.mxu0 0.0
  %2014 = vmatpush1.msra.mxu0 0.0
  %2015 = vmatprep.subr.mxu0 0.0
  %2016 = vmatpush1.msra.mxu0 0.0
  %2017 = vmatprep.subr.mxu0 0.0
  %2018 = vmatpush1.msra.mxu0 0.0
  %2019 = vmatprep.subr.mxu0 0.0
  %2020 = vmatpush1.msra.mxu0 0.0
  %2021 = vmatprep.subr.mxu0 0.0
  %2022 = vmatpush1.msra.mxu0 0.0
  %2023 = vmatprep.subr.mxu0 0.0
  %2024 = vmatpush1.msra.mxu0 0.0
  %2025 = vmatprep.subr.mxu0 0.0
  %2026 = vmatpush1.msra.mxu0 0.0
  %2027 = vmatprep.subr.mxu0 0.0
  %2028 = vmatpush1.msra.mxu0 0.0
  %2029 = vmatprep.subr.mxu0 0.0
  %2030 = vmatpush1.msra.mxu0 0.0
  %2031 = vmatprep.subr.mxu0 0.0
  %2032 = vmatpush1.msra.mxu0 0.0
  %2033 = vmatprep.subr.mxu0 0.0
  %2034 = vmatpush1.msra.mxu0 0.0
  %2035 = vmatprep.subr.mxu0 0.0
  %2036 = vmatpush1.msra.mxu0 0.0
  %2037 = vmatprep.subr.mxu0 0.0
  %2038 = vmatpush1.msra.mxu0 0.0
  %2039 = vmatprep.subr.mxu0 0.0
  %2040 = vmatpush1.msra.mxu0 0.0
  %2041 = vmatprep.subr.mxu0 0.0
  %2042 = vmatpush1.msra.mxu0 0.0
  %2043 = vmatprep.subr.mxu0 0.0
  %2044 = vmatpush1.msra.mxu0 0.0
  %2045 = vmatprep.subr.mxu0 0.0
  %2046 = vmatpush1.msra.mxu0 0.0
  %2047 = vmatprep.subr.mxu0 0.0
  %2048 = vmatpush1.msra.mxu0 0.0
  %2049 = vmatprep.subr.mxu0 0.0
  %2050 = vmatpush1.msra.mxu0 0.0
  %2051 = vmatprep.subr.mxu0 0.0
  %2052 = vmatpush1.msra.mxu0 0.0
  %2053 = vmatprep.subr.mxu0 0.0
  %2054 = vmatpush1.msra.mxu0 0.0
  %2055 = vmatprep.subr.mxu0 0.0
  %2056 = vmatpush1.msra.mxu0 0.0
  %2057 = vmatprep.subr.mxu0 0.0
  %2058 = vmatpush1.msra.mxu0 0.0
  %2059 = vmatprep.mubr.f32.mxu0 0.0
  %2060 = vmatmul.mubr.f32.gmra.mrb[0].mxu0 %v1990
  %v2061 = vpop.f32.mrb[0].mxu0
  %v2062 = vadd.f32 0.0, %v2061
  %v2063 = vpop.f32.mrb[0].mxu0
  %2064 = vmatprep.mubr.f32.mxu0 0.0
  %2065 = vmatmul.mubr.f32.gmra.mrb[0].mxu0 %v1993
  %v2066 = vpop.f32.mrb[0].mxu0
  %v2067 = vadd.f32 0.0, %v2066
  %v2068 = vpop.f32.mrb[0].mxu0
  %2069 = vdwg.mxu0
  %v2070 = vld [vmem:[%s2 + $0x120] sm:$0xff]
  %v2071 = vld [vmem:[%s2 + $0x128] sm:$0xf]
  %v2072 = vsub.f32 %v2062, %v1979
  %v2073 = vsub.f32 %v2067, %v1984
  %2075 = vset.pattern.permute.xlu0 0
  %2076 = vperm.xlu0 %2075, %v2070
  %v2077 = vpop.permute.xlu0 %2076
  %2080 = vset.pattern.permute.xlu0 0
  %2081 = vperm.xlu0 %2080, %v2071
  %v2082 = vpop.permute.xlu0 %2081
  %v2084 = vmul.f32 %v2077, %v2072
  %v2085 = vmul.f32 %v2082, %v2073
  %v2086 = vadd.f32 %v1979, %v2084
  %v2087 = vadd.f32 %v1984, %v2085
  %2088 = vst.msk [vmem:[%s3] sm:$0xff] %vm28, %v2086
  %vm2089 = vcmask 125952
  %2090 = vst.msk [vmem:[%s3 + $0x8] sm:$0xf] %vm2089, %v2087
  // Predicated region
  $region14: #{stylenet_forward.1} parent=0 // pred_check
    _
  $region15: #{stylenet_forward.1} parent=0 // pred_check_branch
    %2092 = sbr.rel (0) target = $region17
  $region16: #{stylenet_forward.1} parent=0 // pred_region
    _
  $region17: #{stylenet_forward.1} parent=0 // pred_fallthru
    _
  // Predicated region
  $region18: #{stylenet_forward.1} parent=0 // pred_check
    _
  $region19: #{stylenet_forward.1} parent=0 // pred_check_branch
    %2094 = sbr.rel (0) target = $region21
  $region20: #{stylenet_forward.1} parent=0 // pred_region
    _
  $region21: #{stylenet_forward.1} parent=0 // pred_fallthru
    _

</llo_original>
